<compile_context>
chip_gen: v7x
topology: tpu7x:2x2x1
jax: 0.10.0
libtpu: 0.0.40
codegen_flags: <defaults>
</compile_context>

<pallas_src>
import functools
import math

import jax
import jax.numpy as jnp
import numpy as np
from jax import lax
from jax.experimental import pallas as pl
from jax.experimental.pallas import tpu as pltpu


def _mha_kernel(inv_scale,
                q_ref, k_ref, v_ref,
                wqt_ref, bq_ref, wkt_ref, bk_ref,
                hmap_ref, hmapt_ref,
                y_ref, w_ref):
    # q/k/v_ref : (Bb, S, F)        wqt/wkt : (F, F)    bq/bk : (1, F)
    # hmap_ref  : (F, H) 0/1 head map,   hmapt_ref : (H, F)
    # y_ref     : (Bb, S, F)        w_ref   : (Bb, S, H) per-head softmax weights
    Bb, S, F = q_ref.shape
    H = hmap_ref.shape[1]
    M = Bb * S

    # Linear projections on the MXU; batch folded into the matmul M dimension.
    q2 = q_ref[...].reshape(M, F)
    k2 = k_ref[...].reshape(M, F)
    q = jnp.dot(q2, wqt_ref[...], preferred_element_type=jnp.float32) + bq_ref[...]
    k = jnp.dot(k2, wkt_ref[...], preferred_element_type=jnp.float32) + bk_ref[...]

    # Diagonal of the per-head score matrix:
    #   diag[m, h] = sum_{j in head h} q[m, j] * k[m, j]
    # done as a matmul against the constant (F, H) head map so data never
    # leaves the F-lane layout (no d-wide reshapes on the VPU/XLU path).
    prod = q * k                                                      # (M, F)
    diag = jnp.dot(prod, hmap_ref[...],
                   preferred_element_type=jnp.float32,
                   precision=lax.Precision.HIGHEST)                   # (M, H)
    logits = (diag * inv_scale).reshape(Bb, S, H)

    # Softmax over the sequence axis, per (batch, head).  Exact divide: the
    # kernel is memory-bound, so the VALU divide is free.
    mx = jnp.max(logits, axis=1, keepdims=True)                       # (Bb, 1, H)
    e = jnp.exp(logits - mx)
    w = e / jnp.sum(e, axis=1, keepdims=True)                         # (Bb, S, H)

    # diag_embed(w) @ V + reshape-from-batches collapses to a per-head scale
    # of V; broadcast the per-head weight back to F lanes with the transposed
    # head map (MXU), again avoiding lane-splitting reshapes.
    scale = jnp.dot(w.reshape(M, H), hmapt_ref[...],
                    preferred_element_type=jnp.float32,
                    precision=lax.Precision.HIGHEST)                  # (M, F)
    y = v_ref[...].reshape(M, F) * scale
    y_ref[...] = y.reshape(Bb, S, F).astype(y_ref.dtype)

    # Emit weights in their natural (Bb, S, H) layout (no in-kernel transpose);
    # the (B*H, S, S) diag_embed is built by the jit-fused glue.
    w_ref[...] = w.astype(w_ref.dtype)


def _pick_batch_tile(B, S, F, itemsize):
    """Size-aware batch tile: largest block that fits a conservative VMEM
    budget; only split the grid when blocks are big enough to amortize the
    per-step pipeline overhead."""
    per_batch = 4 * S * F * itemsize          # q, k, v, y slices per batch element
    vmem_budget = 24 << 20                    # double-buffered blocks; fits v7x 64 MiB
    min_block = 1 << 20                       # ~1 MiB amortizes ~0.35 us per grid step

    # Largest divisor of B whose double-buffered blocks fit the budget.
    bb = 1
    for d in range(1, B + 1):
        if B % d == 0 and 2 * d * per_batch <= vmem_budget:
            bb = d

    n = B // bb
    # When we *are* splitting, prefer an even number of grid steps so both v7x
    # TensorCores get work, as long as blocks stay above the amortization size.
    if n > 1 and n % 2 == 1:
        for d in range(bb - 1, 0, -1):
            if B % d == 0 and (B // d) % 2 == 0 and d * per_batch >= min_block:
                bb = d
                break
    return bb


@functools.partial(jax.jit, static_argnames=("head_num", "temp"))
def multi_head_attention(q, k, v, wq, bq, wk, bk, head_num, temp):
    B, S, F = q.shape
    H = head_num
    d = F // H
    itemsize = jnp.dtype(q.dtype).itemsize

    bb = _pick_batch_tile(B, S, F, itemsize)
    n_tiles = B // bb

    wqt = wq.T                                  # nn.Linear: y = x @ W^T + b
    wkt = wk.T
    bq2 = bq.reshape(1, F)
    bk2 = bk.reshape(1, F)

    # Constant 0/1 head map: hmap[f, h] = 1 iff feature f belongs to head h.
    hmap = (jnp.arange(F)[:, None] // d == jnp.arange(H)[None, :]).astype(jnp.float32)
    hmapt = hmap.T

    inv_scale = 1.0 / (math.sqrt(d) * float(temp))
    kernel = functools.partial(_mha_kernel, inv_scale)

    rep = lambda t: (0, 0)
    blk3 = lambda t: (t, 0, 0)

    # Scoped VMEM sized to the chosen tile; never below any generation's
    # default, never above what fits v7x's 64 MiB physical VMEM.
    blk_bytes = bb * S * F * itemsize
    est = 2 * (4 * blk_bytes + bb * S * H * itemsize) + 4 * F * F * itemsize + (4 << 20)
    vmem_limit = int(min(max(est, 32 << 20), 56 << 20))

    # NOTE: if profiling at large n_tiles (>=3) on v7x still shows exposed DMA,
    # add pipeline_mode=pl.Buffered(3) to the q/k/v in_specs (budget permitting).
    y, w_bsh = pl.pallas_call(
        kernel,
        out_shape=(
            jax.ShapeDtypeStruct((B, S, F), q.dtype),
            jax.ShapeDtypeStruct((B, S, H), q.dtype),
        ),
        grid=(n_tiles,),
        in_specs=[
            pl.BlockSpec((bb, S, F), blk3),     # q
            pl.BlockSpec((bb, S, F), blk3),     # k
            pl.BlockSpec((bb, S, F), blk3),     # v
            pl.BlockSpec((F, F), rep),          # Wq^T
            pl.BlockSpec((1, F), rep),          # bq
            pl.BlockSpec((F, F), rep),          # Wk^T
            pl.BlockSpec((1, F), rep),          # bk
            pl.BlockSpec((F, H), rep),          # head map
            pl.BlockSpec((H, F), rep),          # head map transposed
        ],
        out_specs=(
            pl.BlockSpec((bb, S, F), blk3),     # y
            pl.BlockSpec((bb, S, H), blk3),     # per-head softmax weights
        ),
        compiler_params=pltpu.CompilerParams(
            dimension_semantics=("parallel",),
            vmem_limit_bytes=vmem_limit,
        ),
    )(q, k, v, wqt, bq2, wkt, bk2, hmap, hmapt)

    # jit-fused glue: torch.diag_embed over (B*H, S) built from the tiny weights.
    w_flat = jnp.transpose(w_bsh, (0, 2, 1)).reshape(B * H, S)
    attention = w_flat[:, :, None] * jnp.eye(S, dtype=w_flat.dtype)
    return y, attention


def reference(q, k, v, wq, bq, wk, bk, head_num, temp):
    """Pure-JAX transcription of the PyTorch forward for validation."""
    B, S, F = q.shape
    H = head_num
    d = F // H
    qp = q @ wq.T + bq
    kp = k @ wk.T + bk

    def to_batches(x):
        return x.reshape(B, S, H, d).transpose(0, 2, 1, 3).reshape(B * H, S, d)

    qb, kb, vb = to_batches(qp), to_batches(kp), to_batches(v)
    scores = qb @ jnp.swapaxes(kb, -1, -2) / math.sqrt(d)
    diag = jnp.diagonal(scores, 0, 2, 1)                 # (B*H, S), scores[b, i, i]
    w = jax.nn.softmax(diag / temp, axis=-1)
    attn = w[:, :, None] * jnp.eye(S, dtype=w.dtype)     # diag_embed
    y = attn @ vb
    y = y.reshape(B, H, S, d).transpose(0, 2, 1, 3).reshape(B, S, F)
    return y, attn


if __name__ == "__main__":
    B, S, F, H = 2, 8, 32, 4
    temp = 1.5

    key = jax.random.PRNGKey(0)
    ks = jax.random.split(key, 7)
    q = jax.random.normal(ks[0], (B, S, F), jnp.float32)
    k = jax.random.normal(ks[1], (B, S, F), jnp.float32)
    v = jax.random.normal(ks[2], (B, S, F), jnp.float32)

    lim = 1.0 / math.sqrt(F)   # nn.Linear default init range
    wq = jax.random.uniform(ks[3], (F, F), jnp.float32, -lim, lim)
    bq = jax.random.uniform(ks[4], (F,), jnp.float32, -lim, lim)
    wk = jax.random.uniform(ks[5], (F, F), jnp.float32, -lim, lim)
    bk = jax.random.uniform(ks[6], (F,), jnp.float32, -lim, lim)

    y, attn = multi_head_attention(q, k, v, wq, bq, wk, bk, H, temp)
    jax.block_until_ready((y, attn))

    y_ref, attn_ref = reference(q, k, v, wq, bq, wk, bk, H, temp)
    assert np.allclose(np.asarray(y), np.asarray(y_ref), rtol=2e-3, atol=2e-3)
    assert np.allclose(np.asarray(attn), np.asarray(attn_ref), rtol=2e-3, atol=2e-3)
    print("KERNEL_OK")
</pallas_src>

<mosaic_0001>
module attributes {stable_mosaic.version = 11 : i64} {
  func.func @_mha_kernel(%arg0: i32, %arg1: memref<2x8x32xf32, #tpu.memory_space<vmem>>, %arg2: memref<2x8x32xf32, #tpu.memory_space<vmem>>, %arg3: memref<2x8x32xf32, #tpu.memory_space<vmem>>, %arg4: memref<32x32xf32, #tpu.memory_space<vmem>>, %arg5: memref<1x32xf32, #tpu.memory_space<vmem>>, %arg6: memref<32x32xf32, #tpu.memory_space<vmem>>, %arg7: memref<1x32xf32, #tpu.memory_space<vmem>>, %arg8: memref<32x4xf32, #tpu.memory_space<vmem>>, %arg9: memref<4x32xf32, #tpu.memory_space<vmem>>, %arg10: memref<2x8x32xf32, #tpu.memory_space<vmem>>, %arg11: memref<2x8x4xf32, #tpu.memory_space<vmem>>) attributes {dimension_semantics = [#tpu.dimension_semantics<parallel>], iteration_bounds = array<i64: 1>, scalar_prefetch = 0 : i64, scratch_operands = 0 : i64, tpu.core_type = #tpu.core_type<tc>, window_params = [{transform_indices = @transform_0, window_bounds = array<i64: 2, 8, 32>}, {transform_indices = @transform_1, window_bounds = array<i64: 2, 8, 32>}, {transform_indices = @transform_2, window_bounds = array<i64: 2, 8, 32>}, {pipeline_mode = #tpu.pipeline_mode<synchronous>, transform_indices = @transform_3, window_bounds = array<i64: 32, 32>}, {pipeline_mode = #tpu.pipeline_mode<synchronous>, transform_indices = @transform_4, window_bounds = array<i64: 1, 32>}, {pipeline_mode = #tpu.pipeline_mode<synchronous>, transform_indices = @transform_5, window_bounds = array<i64: 32, 32>}, {pipeline_mode = #tpu.pipeline_mode<synchronous>, transform_indices = @transform_6, window_bounds = array<i64: 1, 32>}, {pipeline_mode = #tpu.pipeline_mode<synchronous>, transform_indices = @transform_7, window_bounds = array<i64: 32, 4>}, {pipeline_mode = #tpu.pipeline_mode<synchronous>, transform_indices = @transform_8, window_bounds = array<i64: 4, 32>}, {transform_indices = @transform_9, window_bounds = array<i64: 2, 8, 32>}, {transform_indices = @transform_10, window_bounds = array<i64: 2, 8, 4>}]} {
    %c0 = arith.constant 0 : index
    %c0_0 = arith.constant 0 : index
    %c0_1 = arith.constant 0 : index
    %0 = vector.load %arg1[%c0, %c0_0, %c0_1] : memref<2x8x32xf32, #tpu.memory_space<vmem>>, vector<2x8x32xf32>
    %1 = vector.shape_cast %0 : vector<2x8x32xf32> to vector<16x32xf32>
    %c0_2 = arith.constant 0 : index
    %c0_3 = arith.constant 0 : index
    %c0_4 = arith.constant 0 : index
    %2 = vector.load %arg2[%c0_2, %c0_3, %c0_4] : memref<2x8x32xf32, #tpu.memory_space<vmem>>, vector<2x8x32xf32>
    %3 = vector.shape_cast %2 : vector<2x8x32xf32> to vector<16x32xf32>
    %c0_5 = arith.constant 0 : index
    %c0_6 = arith.constant 0 : index
    %4 = vector.load %arg4[%c0_5, %c0_6] : memref<32x32xf32, #tpu.memory_space<vmem>>, vector<32x32xf32>
    %cst = arith.constant dense<0.000000e+00> : vector<16x32xf32>
    %5 = tpu.matmul %1, %4, %cst {dimension_numbers = #tpu.dot_dimension_numbers<[1], [0], [0], [1], [0, 0, 1, 1], [], []>} : vector<16x32xf32>, vector<32x32xf32>, vector<16x32xf32> -> vector<16x32xf32>
    %c0_7 = arith.constant 0 : index
    %c0_8 = arith.constant 0 : index
    %6 = vector.load %arg5[%c0_7, %c0_8] : memref<1x32xf32, #tpu.memory_space<vmem>>, vector<1x32xf32>
    %7 = vector.broadcast %6 : vector<1x32xf32> to vector<16x32xf32>
    %8 = arith.addf %5, %7 : vector<16x32xf32>
    %c0_9 = arith.constant 0 : index
    %c0_10 = arith.constant 0 : index
    %9 = vector.load %arg6[%c0_9, %c0_10] : memref<32x32xf32, #tpu.memory_space<vmem>>, vector<32x32xf32>
    %cst_11 = arith.constant dense<0.000000e+00> : vector<16x32xf32>
    %10 = tpu.matmul %3, %9, %cst_11 {dimension_numbers = #tpu.dot_dimension_numbers<[1], [0], [0], [1], [0, 0, 1, 1], [], []>} : vector<16x32xf32>, vector<32x32xf32>, vector<16x32xf32> -> vector<16x32xf32>
    %c0_12 = arith.constant 0 : index
    %c0_13 = arith.constant 0 : index
    %11 = vector.load %arg7[%c0_12, %c0_13] : memref<1x32xf32, #tpu.memory_space<vmem>>, vector<1x32xf32>
    %12 = vector.broadcast %11 : vector<1x32xf32> to vector<16x32xf32>
    %13 = arith.addf %10, %12 : vector<16x32xf32>
    %14 = arith.mulf %8, %13 : vector<16x32xf32>
    %c0_14 = arith.constant 0 : index
    %c0_15 = arith.constant 0 : index
    %15 = vector.load %arg8[%c0_14, %c0_15] : memref<32x4xf32, #tpu.memory_space<vmem>>, vector<32x4xf32>
    %cst_16 = arith.constant dense<0.000000e+00> : vector<16x4xf32>
    %16 = tpu.matmul %14, %15, %cst_16 {dimension_numbers = #tpu.dot_dimension_numbers<[1], [0], [0], [1], [0, 0, 1, 1], [], []>, precision = #tpu.contract_precision<fp32>} : vector<16x32xf32>, vector<32x4xf32>, vector<16x4xf32> -> vector<16x4xf32>
    %cst_17 = arith.constant 0.235702261 : f32
    %17 = vector.broadcast %cst_17 : f32 to vector<16x4xf32>
    %18 = arith.mulf %16, %17 : vector<16x4xf32>
    %19 = vector.shape_cast %18 : vector<16x4xf32> to vector<2x8x4xf32>
    %cst_18 = arith.constant dense<0xFF800000> : vector<2x4xf32>
    %20 = vector.multi_reduction <maximumf>, %19, %cst_18 [1] : vector<2x8x4xf32> to vector<2x4xf32>
    %21 = vector.shape_cast %20 : vector<2x4xf32> to vector<2x1x4xf32>
    %22 = vector.broadcast %21 : vector<2x1x4xf32> to vector<2x8x4xf32>
    %23 = arith.subf %19, %22 : vector<2x8x4xf32>
    %24 = math.exp %23 : vector<2x8x4xf32>
    %cst_19 = arith.constant dense<0.000000e+00> : vector<2x4xf32>
    %25 = vector.multi_reduction <add>, %24, %cst_19 [1] : vector<2x8x4xf32> to vector<2x4xf32>
    %26 = vector.shape_cast %25 : vector<2x4xf32> to vector<2x1x4xf32>
    %27 = vector.broadcast %26 : vector<2x1x4xf32> to vector<2x8x4xf32>
    %28 = arith.divf %24, %27 : vector<2x8x4xf32>
    %29 = vector.shape_cast %28 : vector<2x8x4xf32> to vector<16x4xf32>
    %c0_20 = arith.constant 0 : index
    %c0_21 = arith.constant 0 : index
    %30 = vector.load %arg9[%c0_20, %c0_21] : memref<4x32xf32, #tpu.memory_space<vmem>>, vector<4x32xf32>
    %cst_22 = arith.constant dense<0.000000e+00> : vector<16x32xf32>
    %31 = tpu.matmul %29, %30, %cst_22 {dimension_numbers = #tpu.dot_dimension_numbers<[1], [0], [0], [1], [0, 0, 1, 1], [], []>, precision = #tpu.contract_precision<fp32>} : vector<16x4xf32>, vector<4x32xf32>, vector<16x32xf32> -> vector<16x32xf32>
    %c0_23 = arith.constant 0 : index
    %c0_24 = arith.constant 0 : index
    %c0_25 = arith.constant 0 : index
    %32 = vector.load %arg3[%c0_23, %c0_24, %c0_25] : memref<2x8x32xf32, #tpu.memory_space<vmem>>, vector<2x8x32xf32>
    %33 = vector.shape_cast %32 : vector<2x8x32xf32> to vector<16x32xf32>
    %34 = arith.mulf %33, %31 : vector<16x32xf32>
    %35 = vector.shape_cast %34 : vector<16x32xf32> to vector<2x8x32xf32>
    %c0_26 = arith.constant 0 : index
    %c0_27 = arith.constant 0 : index
    %c0_28 = arith.constant 0 : index
    %36 = vector.load %arg10[%c0_26, %c0_27, %c0_28] : memref<2x8x32xf32, #tpu.memory_space<vmem>>, vector<2x8x32xf32>
    tpu.vector_store %arg10[%c0_26, %c0_27, %c0_28], %35 {strides = array<i32>} : memref<2x8x32xf32, #tpu.memory_space<vmem>>, vector<2x8x32xf32>,
    %c0_29 = arith.constant 0 : index
    %c0_30 = arith.constant 0 : index
    %c0_31 = arith.constant 0 : index
    %37 = vector.load %arg11[%c0_29, %c0_30, %c0_31] : memref<2x8x4xf32, #tpu.memory_space<vmem>>, vector<2x8x4xf32>
    tpu.vector_store %arg11[%c0_29, %c0_30, %c0_31], %28 {strides = array<i32>} : memref<2x8x4xf32, #tpu.memory_space<vmem>>, vector<2x8x4xf32>,
    return
  }
  func.func @transform_0(%arg0: i32) -> (i32, i32, i32) {
    %c0_i32 = arith.constant 0 : i32
    %c0_i32_0 = arith.constant 0 : i32
    %c0_i32_1 = arith.constant 0 : i32
    return %arg0, %c0_i32, %c0_i32_0 : i32, i32, i32
  }
  func.func @transform_1(%arg0: i32) -> (i32, i32, i32) {
    %c0_i32 = arith.constant 0 : i32
    %c0_i32_0 = arith.constant 0 : i32
    %c0_i32_1 = arith.constant 0 : i32
    return %arg0, %c0_i32, %c0_i32_0 : i32, i32, i32
  }
  func.func @transform_2(%arg0: i32) -> (i32, i32, i32) {
    %c0_i32 = arith.constant 0 : i32
    %c0_i32_0 = arith.constant 0 : i32
    %c0_i32_1 = arith.constant 0 : i32
    return %arg0, %c0_i32, %c0_i32_0 : i32, i32, i32
  }
  func.func @transform_3(%arg0: i32) -> (i32, i32) {
    %c0_i32 = arith.constant 0 : i32
    %c0_i32_0 = arith.constant 0 : i32
    %c0_i32_1 = arith.constant 0 : i32
    return %c0_i32, %c0_i32_0 : i32, i32
  }
  func.func @transform_4(%arg0: i32) -> (i32, i32) {
    %c0_i32 = arith.constant 0 : i32
    %c0_i32_0 = arith.constant 0 : i32
    %c0_i32_1 = arith.constant 0 : i32
    return %c0_i32, %c0_i32_0 : i32, i32
  }
  func.func @transform_5(%arg0: i32) -> (i32, i32) {
    %c0_i32 = arith.constant 0 : i32
    %c0_i32_0 = arith.constant 0 : i32
    %c0_i32_1 = arith.constant 0 : i32
    return %c0_i32, %c0_i32_0 : i32, i32
  }
  func.func @transform_6(%arg0: i32) -> (i32, i32) {
    %c0_i32 = arith.constant 0 : i32
    %c0_i32_0 = arith.constant 0 : i32
    %c0_i32_1 = arith.constant 0 : i32
    return %c0_i32, %c0_i32_0 : i32, i32
  }
  func.func @transform_7(%arg0: i32) -> (i32, i32) {
    %c0_i32 = arith.constant 0 : i32
    %c0_i32_0 = arith.constant 0 : i32
    %c0_i32_1 = arith.constant 0 : i32
    return %c0_i32, %c0_i32_0 : i32, i32
  }
  func.func @transform_8(%arg0: i32) -> (i32, i32) {
    %c0_i32 = arith.constant 0 : i32
    %c0_i32_0 = arith.constant 0 : i32
    %c0_i32_1 = arith.constant 0 : i32
    return %c0_i32, %c0_i32_0 : i32, i32
  }
  func.func @transform_9(%arg0: i32) -> (i32, i32, i32) {
    %c0_i32 = arith.constant 0 : i32
    %c0_i32_0 = arith.constant 0 : i32
    %c0_i32_1 = arith.constant 0 : i32
    return %arg0, %c0_i32, %c0_i32_0 : i32, i32, i32
  }
  func.func @transform_10(%arg0: i32) -> (i32, i32, i32) {
    %c0_i32 = arith.constant 0 : i32
    %c0_i32_0 = arith.constant 0 : i32
    %c0_i32_1 = arith.constant 0 : i32
    return %arg0, %c0_i32, %c0_i32_0 : i32, i32, i32
  }
}

</mosaic_0001>

<llo_original>
// kernel: multi_head_attention.1
$region0: #{multi_head_attention.1}
  #allocation0 [shape = 'u32[]', space=smem, size = 0x4, offset = 0x4, fixed_abs, tag = 'smem constant byte address 0x4 - core index']
  #allocation1 [shape = 'u32[144,128]{1,0:T(1,128)}', space=vmem, size = 0x12000, scoped, tag = 'internal scratch']
  %s0 = inlined_call_operand.vmem [shape: f32[2,8,32], index: 0, kind: input, shape index: {}]
  %s1 = inlined_call_operand.vmem [shape: f32[2,8,32], index: 1, kind: input, shape index: {}]
  %s2 = inlined_call_operand.vmem [shape: f32[2,8,32], index: 2, kind: input, shape index: {}]
  %s3 = inlined_call_operand.vmem [shape: f32[32,32], index: 3, kind: input, shape index: {}]
  %s4 = inlined_call_operand.vmem [shape: f32[1,32], index: 4, kind: input, shape index: {}]
  %s5 = inlined_call_operand.vmem [shape: f32[32,32], index: 5, kind: input, shape index: {}]
  %s6 = inlined_call_operand.vmem [shape: f32[1,32], index: 6, kind: input, shape index: {}]
  %s7 = inlined_call_operand.vmem [shape: f32[32,4], index: 7, kind: input, shape index: {}]
  %s8 = inlined_call_operand.vmem [shape: f32[4,32], index: 8, kind: input, shape index: {}]
  %s9 = inlined_call_operand.hbm [shape: f32[2,8,32], index: 9, kind: output, shape index: {0}]
  %s10 = inlined_call_operand.vmem [shape: f32[2,8,4], index: 10, kind: output, shape index: {1}]
  %11 = xla_tuple %s9, %s10
  %s12 = sld [smem:[#allocation0]]
  $region54: #{multi_head_attention.1} parent=0
    _
  %s14 = ssub.s32 1, %s12
  %s15 = scalar_select 0, %s14, %s12
  $region1: #{multi_head_attention.1} parent=0
    #allocation2 [shape = 'u8[8192]{0}', space=vmem, size = 0x2000, scoped, tag = 'output window, operand 0, single buffered']
    #allocation3 [shape = 's32[1]{0}', space=sflag, size = 0x4, scoped, tag = 'scoped memory for multi_head_attention.1']
    %16 = vsyncpa [#allocation3], 0
    // Predicated region
    $region2: #{multi_head_attention.1} parent=1 // pred_check
      _
    $region3: #{multi_head_attention.1} parent=1 // pred_check_branch
      %18 = sbr.rel (0) target = $region5
    $region4: #{multi_head_attention.1} parent=1 // pred_region
      _
    $region5: #{multi_head_attention.1} parent=1 // pred_fallthru
      _
    // Predicated region
    $region6: #{multi_head_attention.1} parent=1 // pred_check
      _
    $region7: #{multi_head_attention.1} parent=1 // pred_check_branch
      %20 = sbr.rel (0) target = $region9
    $region8: #{multi_head_attention.1} parent=1 // pred_region
      _
    $region9: #{multi_head_attention.1} parent=1 // pred_fallthru
      _
    // Predicated region
    $region10: #{multi_head_attention.1} parent=1 // pred_check
      _
    $region11: #{multi_head_attention.1} parent=1 // pred_check_branch
      %22 = sbr.rel (0) target = $region13
    $region12: #{multi_head_attention.1} parent=1 // pred_region
      _
    $region13: #{multi_head_attention.1} parent=1 // pred_fallthru
      _
    // Predicated region
    $region14: #{multi_head_attention.1} parent=1 // pred_check
      _
    $region15: #{multi_head_attention.1} parent=1 // pred_check_branch
      %24 = sbr.rel (0) target = $region17
    $region16: #{multi_head_attention.1} parent=1 // pred_region
      _
    $region17: #{multi_head_attention.1} parent=1 // pred_fallthru
      _
    // Predicated region
    $region18: #{multi_head_attention.1} parent=1 // pred_check
      _
    $region19: #{multi_head_attention.1} parent=1 // pred_check_branch
      %26 = sbr.rel (0) target = $region21
    $region20: #{multi_head_attention.1} parent=1 // pred_region
      _
    $region21: #{multi_head_attention.1} parent=1 // pred_fallthru
      _
    // Predicated region
    $region22: #{multi_head_attention.1} parent=1 // pred_check
      _
    $region23: #{multi_head_attention.1} parent=1 // pred_check_branch
      %28 = sbr.rel (0) target = $region25
    $region24: #{multi_head_attention.1} parent=1 // pred_region
      _
    $region25: #{multi_head_attention.1} parent=1 // pred_fallthru
      _
    // Predicated region
    $region26: #{multi_head_attention.1} parent=1 // pred_check
      _
    $region27: #{multi_head_attention.1} parent=1 // pred_check_branch
      %30 = sbr.rel (0) target = $region29
    $region28: #{multi_head_attention.1} parent=1 // pred_region
      _
    $region29: #{multi_head_attention.1} parent=1 // pred_fallthru
      _
    // Predicated region
    $region30: #{multi_head_attention.1} parent=1 // pred_check
      _
    $region31: #{multi_head_attention.1} parent=1 // pred_check_branch
      %32 = sbr.rel (0) target = $region33
    $region32: #{multi_head_attention.1} parent=1 // pred_region
      _
    $region33: #{multi_head_attention.1} parent=1 // pred_fallthru
      _
    // Predicated region
    $region34: #{multi_head_attention.1} parent=1 // pred_check
      _
    $region35: #{multi_head_attention.1} parent=1 // pred_check_branch
      %34 = sbr.rel (0) target = $region37
    $region36: #{multi_head_attention.1} parent=1 // pred_region
      _
    $region37: #{multi_head_attention.1} parent=1 // pred_fallthru
      _
    %v35 = vld [vmem:[%s0] sm:$0xff]
    %v36 = vld [vmem:[%s0 + $0x8] sm:$0xff]
    %v37 = vld [vmem:[%s1] sm:$0xff]
    %v38 = vld [vmem:[%s1 + $0x8] sm:$0xff]
    %v39 = vld [vmem:[%s3] sm:$0xff]
    %v40 = vld [vmem:[%s3 + $0x8] sm:$0xff]
    %v41 = vld [vmem:[%s3 + $0x10] sm:$0xff]
    %v42 = vld [vmem:[%s3 + $0x18] sm:$0xff]
    %v43 = vld [vmem:[%s4] sm:$0x1]
    %v45 = vlaneseq
    %v46 = vshrl.u32 %v45, 7
    %v47 = vsub.s32 0, %v46
    %v48 = vrot.slane %v43, %v47
    %vm50 = vcmask 261120
    %v52 = vsel %vm50, %v35, 0
    %v55 = vsel %vm50, %v36, 0
    %57 = vmatprep.subr.mxu0 0.0
    %58 = vmatpush1.msra.mxu0 %v39
    %59 = vmatprep.subr.mxu0 0.0
    %60 = vmatpush1.msra.mxu0 %v40
    %61 = vmatprep.subr.mxu0 0.0
    %62 = vmatpush1.msra.mxu0 %v41
    %63 = vmatprep.subr.mxu0 0.0
    %64 = vmatpush1.msra.mxu0 %v42
    %65 = vmatprep.subr.mxu0 0.0
    %66 = vmatpush1.msra.mxu0 0.0
    %67 = vmatprep.subr.mxu0 0.0
    %68 = vmatpush1.msra.mxu0 0.0
    %69 = vmatprep.subr.mxu0 0.0
    %70 = vmatpush1.msra.mxu0 0.0
    %71 = vmatprep.subr.mxu0 0.0
    %72 = vmatpush1.msra.mxu0 0.0
    %73 = vmatprep.subr.mxu0 0.0
    %74 = vmatpush1.msra.mxu0 0.0
    %75 = vmatprep.subr.mxu0 0.0
    %76 = vmatpush1.msra.mxu0 0.0
    %77 = vmatprep.subr.mxu0 0.0
    %78 = vmatpush1.msra.mxu0 0.0
    %79 = vmatprep.subr.mxu0 0.0
    %80 = vmatpush1.msra.mxu0 0.0
    %81 = vmatprep.subr.mxu0 0.0
    %82 = vmatpush1.msra.mxu0 0.0
    %83 = vmatprep.subr.mxu0 0.0
    %84 = vmatpush1.msra.mxu0 0.0
    %85 = vmatprep.subr.mxu0 0.0
    %86 = vmatpush1.msra.mxu0 0.0
    %87 = vmatprep.subr.mxu0 0.0
    %88 = vmatpush1.msra.mxu0 0.0
    %89 = vmatprep.subr.mxu0 0.0
    %90 = vmatpush1.msra.mxu0 0.0
    %91 = vmatprep.subr.mxu0 0.0
    %92 = vmatpush1.msra.mxu0 0.0
    %93 = vmatprep.subr.mxu0 0.0
    %94 = vmatpush1.msra.mxu0 0.0
    %95 = vmatprep.subr.mxu0 0.0
    %96 = vmatpush1.msra.mxu0 0.0
    %97 = vmatprep.subr.mxu0 0.0
    %98 = vmatpush1.msra.mxu0 0.0
    %99 = vmatprep.subr.mxu0 0.0
    %100 = vmatpush1.msra.mxu0 0.0
    %101 = vmatprep.subr.mxu0 0.0
    %102 = vmatpush1.msra.mxu0 0.0
    %103 = vmatprep.subr.mxu0 0.0
    %104 = vmatpush1.msra.mxu0 0.0
    %105 = vmatprep.subr.mxu0 0.0
    %106 = vmatpush1.msra.mxu0 0.0
    %107 = vmatprep.subr.mxu0 0.0
    %108 = vmatpush1.msra.mxu0 0.0
    %109 = vmatprep.subr.mxu0 0.0
    %110 = vmatpush1.msra.mxu0 0.0
    %111 = vmatprep.subr.mxu0 0.0
    %112 = vmatpush1.msra.mxu0 0.0
    %113 = vmatprep.subr.mxu0 0.0
    %114 = vmatpush1.msra.mxu0 0.0
    %115 = vmatprep.subr.mxu0 0.0
    %116 = vmatpush1.msra.mxu0 0.0
    %117 = vmatprep.subr.mxu0 0.0
    %118 = vmatpush1.msra.mxu0 0.0
    %119 = vmatprep.subr.mxu0 0.0
    %120 = vmatpush1.msra.mxu0 0.0
    %121 = vmatprep.mubr.f32.mxu0 0.0
    %122 = vmatmul.mubr.f32.gmra.mrb[0].mxu0 %v52
    %v123 = vpop.f32.mrb[0].mxu0
    %v124 = vadd.f32 %v48, %v123
    %v125 = vpop.f32.mrb[0].mxu0
    %126 = vmatprep.mubr.f32.mxu0 0.0
    %127 = vmatmul.mubr.f32.gmra.mrb[0].mxu0 %v55
    %v128 = vpop.f32.mrb[0].mxu0
    %v129 = vadd.f32 %v48, %v128
    %v130 = vpop.f32.mrb[0].mxu0
    %131 = vdwg.mxu0
    %v132 = vld [vmem:[%s5] sm:$0xff]
    %v133 = vld [vmem:[%s5 + $0x8] sm:$0xff]
    %v134 = vld [vmem:[%s5 + $0x10] sm:$0xff]
    %v135 = vld [vmem:[%s5 + $0x18] sm:$0xff]
    %v136 = vld [vmem:[%s6] sm:$0x1]
    %v138 = vlaneseq
    %v139 = vshrl.u32 %v138, 7
    %v140 = vsub.s32 0, %v139
    %v141 = vrot.slane %v136, %v140
    %v144 = vsel %vm50, %v37, 0
    %v147 = vsel %vm50, %v38, 0
    %149 = vmatprep.subr.mxu0 0.0
    %150 = vmatpush1.msra.mxu0 %v132
    %151 = vmatprep.subr.mxu0 0.0
    %152 = vmatpush1.msra.mxu0 %v133
    %153 = vmatprep.subr.mxu0 0.0
    %154 = vmatpush1.msra.mxu0 %v134
    %155 = vmatprep.subr.mxu0 0.0
    %156 = vmatpush1.msra.mxu0 %v135
    %157 = vmatprep.subr.mxu0 0.0
    %158 = vmatpush1.msra.mxu0 0.0
    %159 = vmatprep.subr.mxu0 0.0
    %160 = vmatpush1.msra.mxu0 0.0
    %161 = vmatprep.subr.mxu0 0.0
    %162 = vmatpush1.msra.mxu0 0.0
    %163 = vmatprep.subr.mxu0 0.0
    %164 = vmatpush1.msra.mxu0 0.0
    %165 = vmatprep.subr.mxu0 0.0
    %166 = vmatpush1.msra.mxu0 0.0
    %167 = vmatprep.subr.mxu0 0.0
    %168 = vmatpush1.msra.mxu0 0.0
    %169 = vmatprep.subr.mxu0 0.0
    %170 = vmatpush1.msra.mxu0 0.0
    %171 = vmatprep.subr.mxu0 0.0
    %172 = vmatpush1.msra.mxu0 0.0
    %173 = vmatprep.subr.mxu0 0.0
    %174 = vmatpush1.msra.mxu0 0.0
    %175 = vmatprep.subr.mxu0 0.0
    %176 = vmatpush1.msra.mxu0 0.0
    %177 = vmatprep.subr.mxu0 0.0
    %178 = vmatpush1.msra.mxu0 0.0
    %179 = vmatprep.subr.mxu0 0.0
    %180 = vmatpush1.msra.mxu0 0.0
    %181 = vmatprep.subr.mxu0 0.0
    %182 = vmatpush1.msra.mxu0 0.0
    %183 = vmatprep.subr.mxu0 0.0
    %184 = vmatpush1.msra.mxu0 0.0
    %185 = vmatprep.subr.mxu0 0.0
    %186 = vmatpush1.msra.mxu0 0.0
    %187 = vmatprep.subr.mxu0 0.0
    %188 = vmatpush1.msra.mxu0 0.0
    %189 = vmatprep.subr.mxu0 0.0
    %190 = vmatpush1.msra.mxu0 0.0
    %191 = vmatprep.subr.mxu0 0.0
    %192 = vmatpush1.msra.mxu0 0.0
    %193 = vmatprep.subr.mxu0 0.0
    %194 = vmatpush1.msra.mxu0 0.0
    %195 = vmatprep.subr.mxu0 0.0
    %196 = vmatpush1.msra.mxu0 0.0
    %197 = vmatprep.subr.mxu0 0.0
    %198 = vmatpush1.msra.mxu0 0.0
    %199 = vmatprep.subr.mxu0 0.0
    %200 = vmatpush1.msra.mxu0 0.0
    %201 = vmatprep.subr.mxu0 0.0
    %202 = vmatpush1.msra.mxu0 0.0
    %203 = vmatprep.subr.mxu0 0.0
    %204 = vmatpush1.msra.mxu0 0.0
    %205 = vmatprep.subr.mxu0 0.0
    %206 = vmatpush1.msra.mxu0 0.0
    %207 = vmatprep.subr.mxu0 0.0
    %208 = vmatpush1.msra.mxu0 0.0
    %209 = vmatprep.subr.mxu0 0.0
    %210 = vmatpush1.msra.mxu0 0.0
    %211 = vmatprep.subr.mxu0 0.0
    %212 = vmatpush1.msra.mxu0 0.0
    %213 = vmatprep.mubr.f32.mxu0 0.0
    %214 = vmatmul.mubr.f32.gmra.mrb[0].mxu0 %v144
    %v215 = vpop.f32.mrb[0].mxu0
    %v216 = vadd.f32 %v141, %v215
    %v217 = vpop.f32.mrb[0].mxu0
    %218 = vmatprep.mubr.f32.mxu0 0.0
    %219 = vmatmul.mubr.f32.gmra.mrb[0].mxu0 %v147
    %v220 = vpop.f32.mrb[0].mxu0
    %v221 = vadd.f32 %v141, %v220
    %v222 = vpop.f32.mrb[0].mxu0
    %223 = vdwg.mxu0
    %v224 = vmul.f32 %v124, %v216
    %v225 = vmul.f32 %v129, %v221
    %v226 = vld [vmem:[%s7] sm:$0xff]
    %v227 = vld [vmem:[%s7 + $0x8] sm:$0xff]
    %v228 = vld [vmem:[%s7 + $0x10] sm:$0xff]
    %v229 = vld [vmem:[%s7 + $0x18] sm:$0xff]
    %v231 = vsel %vm50, %v224, 0
    %v234 = vsel %vm50, %v225, 0
    %236 = vmatprep.subr.mxu0 0.0
    %v237 = vand.u32 %v226, 4294901760
    %238 = vmatpush1.msra.mxu0 %v237
    %239 = vmatprep.subr.mxu0 0.0
    %v240 = vand.u32 %v227, 4294901760
    %241 = vmatpush1.msra.mxu0 %v240
    %242 = vmatprep.subr.mxu0 0.0
    %v243 = vand.u32 %v228, 4294901760
    %244 = vmatpush1.msra.mxu0 %v243
    %245 = vmatprep.subr.mxu0 0.0
    %v246 = vand.u32 %v229, 4294901760
    %247 = vmatpush1.msra.mxu0 %v246
    %248 = vmatprep.subr.mxu0 0.0
    %249 = vmatpush1.msra.mxu0 0.0
    %250 = vmatprep.subr.mxu0 0.0
    %251 = vmatpush1.msra.mxu0 0.0
    %252 = vmatprep.subr.mxu0 0.0
    %253 = vmatpush1.msra.mxu0 0.0
    %254 = vmatprep.subr.mxu0 0.0
    %255 = vmatpush1.msra.mxu0 0.0
    %256 = vmatprep.subr.mxu0 0.0
    %257 = vmatpush1.msra.mxu0 0.0
    %258 = vmatprep.subr.mxu0 0.0
    %259 = vmatpush1.msra.mxu0 0.0
    %260 = vmatprep.subr.mxu0 0.0
    %261 = vmatpush1.msra.mxu0 0.0
    %262 = vmatprep.subr.mxu0 0.0
    %263 = vmatpush1.msra.mxu0 0.0
    %264 = vmatprep.subr.mxu0 0.0
    %265 = vmatpush1.msra.mxu0 0.0
    %266 = vmatprep.subr.mxu0 0.0
    %267 = vmatpush1.msra.mxu0 0.0
    %268 = vmatprep.subr.mxu0 0.0
    %269 = vmatpush1.msra.mxu0 0.0
    %270 = vmatprep.subr.mxu0 0.0
    %271 = vmatpush1.msra.mxu0 0.0
    %272 = vmatprep.subr.mxu0 0.0
    %273 = vmatpush1.msra.mxu0 0.0
    %274 = vmatprep.subr.mxu0 0.0
    %275 = vmatpush1.msra.mxu0 0.0
    %276 = vmatprep.subr.mxu0 0.0
    %277 = vmatpush1.msra.mxu0 0.0
    %278 = vmatprep.subr.mxu0 0.0
    %279 = vmatpush1.msra.mxu0 0.0
    %280 = vmatprep.subr.mxu0 0.0
    %281 = vmatpush1.msra.mxu0 0.0
    %282 = vmatprep.subr.mxu0 0.0
    %283 = vmatpush1.msra.mxu0 0.0
    %284 = vmatprep.subr.mxu0 0.0
    %285 = vmatpush1.msra.mxu0 0.0
    %286 = vmatprep.subr.mxu0 0.0
    %287 = vmatpush1.msra.mxu0 0.0
    %288 = vmatprep.subr.mxu0 0.0
    %289 = vmatpush1.msra.mxu0 0.0
    %290 = vmatprep.subr.mxu0 0.0
    %291 = vmatpush1.msra.mxu0 0.0
    %292 = vmatprep.subr.mxu0 0.0
    %293 = vmatpush1.msra.mxu0 0.0
    %294 = vmatprep.subr.mxu0 0.0
    %295 = vmatpush1.msra.mxu0 0.0
    %296 = vmatprep.subr.mxu0 0.0
    %297 = vmatpush1.msra.mxu0 0.0
    %298 = vmatprep.subr.mxu0 0.0
    %299 = vmatpush1.msra.mxu0 0.0
    %300 = vmatprep.subr.mxu0 0.0
    %301 = vmatpush1.msra.mxu0 0.0
    %302 = vmatprep.subr.mxu0 0.0
    %303 = vmatpush1.msra.mxu0 0.0
    %304 = vmatprep.mubr.f32.mxu0 0.0
    %v305 = vand.u32 %v231, 4294901760
    %v306 = vsub.f32 %v231, %v305
    %v307 = vand.u32 %v306, 4294901760
    %v308 = vsub.f32 %v306, %v307
    %v309 = vand.u32 %v308, 4294901760
    %310 = vmatmul.mubr.f32.gmra.mrb[0].mxu0 %v309
    %v311 = vpop.f32.mrb[0].mxu0
    %v312 = vadd.f32 0.0, %v311
    %v313 = vpop.f32.mrb[0].mxu0
    %314 = vmatprep.mubr.f32.mxu0 0.0
    %v315 = vand.u32 %v234, 4294901760
    %v316 = vsub.f32 %v234, %v315
    %v317 = vand.u32 %v316, 4294901760
    %v318 = vsub.f32 %v316, %v317
    %v319 = vand.u32 %v318, 4294901760
    %320 = vmatmul.mubr.f32.gmra.mrb[0].mxu0 %v319
    %v321 = vpop.f32.mrb[0].mxu0
    %v322 = vadd.f32 0.0, %v321
    %v323 = vpop.f32.mrb[0].mxu0
    %324 = vdwg.mxu0
    %325 = vmatprep.subr.mxu0 0.0
    %v326 = vand.u32 %v226, 4294901760
    %v327 = vsub.f32 %v226, %v326
    %v328 = vand.u32 %v327, 4294901760
    %v329 = vsub.f32 %v327, %v328
    %v330 = vand.u32 %v329, 4294901760
    %331 = vmatpush1.msra.mxu0 %v330
    %332 = vmatprep.subr.mxu0 0.0
    %v333 = vand.u32 %v227, 4294901760
    %v334 = vsub.f32 %v227, %v333
    %v335 = vand.u32 %v334, 4294901760
    %v336 = vsub.f32 %v334, %v335
    %v337 = vand.u32 %v336, 4294901760
    %338 = vmatpush1.msra.mxu0 %v337
    %339 = vmatprep.subr.mxu0 0.0
    %v340 = vand.u32 %v228, 4294901760
    %v341 = vsub.f32 %v228, %v340
    %v342 = vand.u32 %v341, 4294901760
    %v343 = vsub.f32 %v341, %v342
    %v344 = vand.u32 %v343, 4294901760
    %345 = vmatpush1.msra.mxu0 %v344
    %346 = vmatprep.subr.mxu0 0.0
    %v347 = vand.u32 %v229, 4294901760
    %v348 = vsub.f32 %v229, %v347
    %v349 = vand.u32 %v348, 4294901760
    %v350 = vsub.f32 %v348, %v349
    %v351 = vand.u32 %v350, 4294901760
    %352 = vmatpush1.msra.mxu0 %v351
    %353 = vmatprep.subr.mxu0 0.0
    %354 = vmatpush1.msra.mxu0 0.0
    %355 = vmatprep.subr.mxu0 0.0
    %356 = vmatpush1.msra.mxu0 0.0
    %357 = vmatprep.subr.mxu0 0.0
    %358 = vmatpush1.msra.mxu0 0.0
    %359 = vmatprep.subr.mxu0 0.0
    %360 = vmatpush1.msra.mxu0 0.0
    %361 = vmatprep.subr.mxu0 0.0
    %362 = vmatpush1.msra.mxu0 0.0
    %363 = vmatprep.subr.mxu0 0.0
    %364 = vmatpush1.msra.mxu0 0.0
    %365 = vmatprep.subr.mxu0 0.0
    %366 = vmatpush1.msra.mxu0 0.0
    %367 = vmatprep.subr.mxu0 0.0
    %368 = vmatpush1.msra.mxu0 0.0
    %369 = vmatprep.subr.mxu0 0.0
    %370 = vmatpush1.msra.mxu0 0.0
    %371 = vmatprep.subr.mxu0 0.0
    %372 = vmatpush1.msra.mxu0 0.0
    %373 = vmatprep.subr.mxu0 0.0
    %374 = vmatpush1.msra.mxu0 0.0
    %375 = vmatprep.subr.mxu0 0.0
    %376 = vmatpush1.msra.mxu0 0.0
    %377 = vmatprep.subr.mxu0 0.0
    %378 = vmatpush1.msra.mxu0 0.0
    %379 = vmatprep.subr.mxu0 0.0
    %380 = vmatpush1.msra.mxu0 0.0
    %381 = vmatprep.subr.mxu0 0.0
    %382 = vmatpush1.msra.mxu0 0.0
    %383 = vmatprep.subr.mxu0 0.0
    %384 = vmatpush1.msra.mxu0 0.0
    %385 = vmatprep.subr.mxu0 0.0
    %386 = vmatpush1.msra.mxu0 0.0
    %387 = vmatprep.subr.mxu0 0.0
    %388 = vmatpush1.msra.mxu0 0.0
    %389 = vmatprep.subr.mxu0 0.0
    %390 = vmatpush1.msra.mxu0 0.0
    %391 = vmatprep.subr.mxu0 0.0
    %392 = vmatpush1.msra.mxu0 0.0
    %393 = vmatprep.subr.mxu0 0.0
    %394 = vmatpush1.msra.mxu0 0.0
    %395 = vmatprep.subr.mxu0 0.0
    %396 = vmatpush1.msra.mxu0 0.0
    %397 = vmatprep.subr.mxu0 0.0
    %398 = vmatpush1.msra.mxu0 0.0
    %399 = vmatprep.subr.mxu0 0.0
    %400 = vmatpush1.msra.mxu0 0.0
    %401 = vmatprep.subr.mxu0 0.0
    %402 = vmatpush1.msra.mxu0 0.0
    %403 = vmatprep.subr.mxu0 0.0
    %404 = vmatpush1.msra.mxu0 0.0
    %405 = vmatprep.subr.mxu0 0.0
    %406 = vmatpush1.msra.mxu0 0.0
    %407 = vmatprep.subr.mxu0 0.0
    %408 = vmatpush1.msra.mxu0 0.0
    %409 = vmatprep.mubr.f32.mxu0 0.0
    %v410 = vand.u32 %v231, 4294901760
    %411 = vmatmul.mubr.f32.gmra.mrb[0].mxu0 %v410
    %v412 = vpop.f32.mrb[0].mxu0
    %v413 = vadd.f32 %v312, %v412
    %v414 = vpop.f32.mrb[0].mxu0
    %415 = vmatprep.mubr.f32.mxu0 0.0
    %v416 = vand.u32 %v234, 4294901760
    %417 = vmatmul.mubr.f32.gmra.mrb[0].mxu0 %v416
    %v418 = vpop.f32.mrb[0].mxu0
    %v419 = vadd.f32 %v322, %v418
    %v420 = vpop.f32.mrb[0].mxu0
    %421 = vdwg.mxu0
    %422 = vmatprep.subr.mxu0 0.0
    %v423 = vand.u32 %v226, 4294901760
    %v424 = vsub.f32 %v226, %v423
    %425 = vmatpush1.msra.mxu0 %v424
    %426 = vmatprep.subr.mxu0 0.0
    %v427 = vand.u32 %v227, 4294901760
    %v428 = vsub.f32 %v227, %v427
    %429 = vmatpush1.msra.mxu0 %v428
    %430 = vmatprep.subr.mxu0 0.0
    %v431 = vand.u32 %v228, 4294901760
    %v432 = vsub.f32 %v228, %v431
    %433 = vmatpush1.msra.mxu0 %v432
    %434 = vmatprep.subr.mxu0 0.0
    %v435 = vand.u32 %v229, 4294901760
    %v436 = vsub.f32 %v229, %v435
    %437 = vmatpush1.msra.mxu0 %v436
    %438 = vmatprep.subr.mxu0 0.0
    %439 = vmatpush1.msra.mxu0 0.0
    %440 = vmatprep.subr.mxu0 0.0
    %441 = vmatpush1.msra.mxu0 0.0
    %442 = vmatprep.subr.mxu0 0.0
    %443 = vmatpush1.msra.mxu0 0.0
    %444 = vmatprep.subr.mxu0 0.0
    %445 = vmatpush1.msra.mxu0 0.0
    %446 = vmatprep.subr.mxu0 0.0
    %447 = vmatpush1.msra.mxu0 0.0
    %448 = vmatprep.subr.mxu0 0.0
    %449 = vmatpush1.msra.mxu0 0.0
    %450 = vmatprep.subr.mxu0 0.0
    %451 = vmatpush1.msra.mxu0 0.0
    %452 = vmatprep.subr.mxu0 0.0
    %453 = vmatpush1.msra.mxu0 0.0
    %454 = vmatprep.subr.mxu0 0.0
    %455 = vmatpush1.msra.mxu0 0.0
    %456 = vmatprep.subr.mxu0 0.0
    %457 = vmatpush1.msra.mxu0 0.0
    %458 = vmatprep.subr.mxu0 0.0
    %459 = vmatpush1.msra.mxu0 0.0
    %460 = vmatprep.subr.mxu0 0.0
    %461 = vmatpush1.msra.mxu0 0.0
    %462 = vmatprep.subr.mxu0 0.0
    %463 = vmatpush1.msra.mxu0 0.0
    %464 = vmatprep.subr.mxu0 0.0
    %465 = vmatpush1.msra.mxu0 0.0
    %466 = vmatprep.subr.mxu0 0.0
    %467 = vmatpush1.msra.mxu0 0.0
    %468 = vmatprep.subr.mxu0 0.0
    %469 = vmatpush1.msra.mxu0 0.0
    %470 = vmatprep.subr.mxu0 0.0
    %471 = vmatpush1.msra.mxu0 0.0
    %472 = vmatprep.subr.mxu0 0.0
    %473 = vmatpush1.msra.mxu0 0.0
    %474 = vmatprep.subr.mxu0 0.0
    %475 = vmatpush1.msra.mxu0 0.0
    %476 = vmatprep.subr.mxu0 0.0
    %477 = vmatpush1.msra.mxu0 0.0
    %478 = vmatprep.subr.mxu0 0.0
    %479 = vmatpush1.msra.mxu0 0.0
    %480 = vmatprep.subr.mxu0 0.0
    %481 = vmatpush1.msra.mxu0 0.0
    %482 = vmatprep.subr.mxu0 0.0
    %483 = vmatpush1.msra.mxu0 0.0
    %484 = vmatprep.subr.mxu0 0.0
    %485 = vmatpush1.msra.mxu0 0.0
    %486 = vmatprep.subr.mxu0 0.0
    %487 = vmatpush1.msra.mxu0 0.0
    %488 = vmatprep.subr.mxu0 0.0
    %489 = vmatpush1.msra.mxu0 0.0
    %490 = vmatprep.subr.mxu0 0.0
    %491 = vmatpush1.msra.mxu0 0.0
    %492 = vmatprep.subr.mxu0 0.0
    %493 = vmatpush1.msra.mxu0 0.0
    %494 = vmatprep.mubr.f32.mxu0 0.0
    %v495 = vand.u32 %v231, 4294901760
    %v496 = vsub.f32 %v231, %v495
    %497 = vmatmul.mubr.f32.gmra.mrb[0].mxu0 %v496
    %v498 = vpop.f32.mrb[0].mxu0
    %v499 = vadd.f32 %v413, %v498
    %v500 = vpop.f32.mrb[0].mxu0
    %501 = vmatprep.mubr.f32.mxu0 0.0
    %v502 = vand.u32 %v234, 4294901760
    %v503 = vsub.f32 %v234, %v502
    %504 = vmatmul.mubr.f32.gmra.mrb[0].mxu0 %v503
    %v505 = vpop.f32.mrb[0].mxu0
    %v506 = vadd.f32 %v419, %v505
    %v507 = vpop.f32.mrb[0].mxu0
    %508 = vdwg.mxu0
    %509 = vmatprep.subr.mxu0 0.0
    %v510 = vand.u32 %v226, 4294901760
    %511 = vmatpush1.msra.mxu0 %v510
    %512 = vmatprep.subr.mxu0 0.0
    %v513 = vand.u32 %v227, 4294901760
    %514 = vmatpush1.msra.mxu0 %v513
    %515 = vmatprep.subr.mxu0 0.0
    %v516 = vand.u32 %v228, 4294901760
    %517 = vmatpush1.msra.mxu0 %v516
    %518 = vmatprep.subr.mxu0 0.0
    %v519 = vand.u32 %v229, 4294901760
    %520 = vmatpush1.msra.mxu0 %v519
    %521 = vmatprep.subr.mxu0 0.0
    %522 = vmatpush1.msra.mxu0 0.0
    %523 = vmatprep.subr.mxu0 0.0
    %524 = vmatpush1.msra.mxu0 0.0
    %525 = vmatprep.subr.mxu0 0.0
    %526 = vmatpush1.msra.mxu0 0.0
    %527 = vmatprep.subr.mxu0 0.0
    %528 = vmatpush1.msra.mxu0 0.0
    %529 = vmatprep.subr.mxu0 0.0
    %530 = vmatpush1.msra.mxu0 0.0
    %531 = vmatprep.subr.mxu0 0.0
    %532 = vmatpush1.msra.mxu0 0.0
    %533 = vmatprep.subr.mxu0 0.0
    %534 = vmatpush1.msra.mxu0 0.0
    %535 = vmatprep.subr.mxu0 0.0
    %536 = vmatpush1.msra.mxu0 0.0
    %537 = vmatprep.subr.mxu0 0.0
    %538 = vmatpush1.msra.mxu0 0.0
    %539 = vmatprep.subr.mxu0 0.0
    %540 = vmatpush1.msra.mxu0 0.0
    %541 = vmatprep.subr.mxu0 0.0
    %542 = vmatpush1.msra.mxu0 0.0
    %543 = vmatprep.subr.mxu0 0.0
    %544 = vmatpush1.msra.mxu0 0.0
    %545 = vmatprep.subr.mxu0 0.0
    %546 = vmatpush1.msra.mxu0 0.0
    %547 = vmatprep.subr.mxu0 0.0
    %548 = vmatpush1.msra.mxu0 0.0
    %549 = vmatprep.subr.mxu0 0.0
    %550 = vmatpush1.msra.mxu0 0.0
    %551 = vmatprep.subr.mxu0 0.0
    %552 = vmatpush1.msra.mxu0 0.0
    %553 = vmatprep.subr.mxu0 0.0
    %554 = vmatpush1.msra.mxu0 0.0
    %555 = vmatprep.subr.mxu0 0.0
    %556 = vmatpush1.msra.mxu0 0.0
    %557 = vmatprep.subr.mxu0 0.0
    %558 = vmatpush1.msra.mxu0 0.0
    %559 = vmatprep.subr.mxu0 0.0
    %560 = vmatpush1.msra.mxu0 0.0
    %561 = vmatprep.subr.mxu0 0.0
    %562 = vmatpush1.msra.mxu0 0.0
    %563 = vmatprep.subr.mxu0 0.0
    %564 = vmatpush1.msra.mxu0 0.0
    %565 = vmatprep.subr.mxu0 0.0
    %566 = vmatpush1.msra.mxu0 0.0
    %567 = vmatprep.subr.mxu0 0.0
    %568 = vmatpush1.msra.mxu0 0.0
    %569 = vmatprep.subr.mxu0 0.0
    %570 = vmatpush1.msra.mxu0 0.0
    %571 = vmatprep.subr.mxu0 0.0
    %572 = vmatpush1.msra.mxu0 0.0
    %573 = vmatprep.subr.mxu0 0.0
    %574 = vmatpush1.msra.mxu0 0.0
    %575 = vmatprep.subr.mxu0 0.0
    %576 = vmatpush1.msra.mxu0 0.0
    %577 = vmatprep.mubr.f32.mxu0 0.0
    %v578 = vand.u32 %v231, 4294901760
    %v579 = vsub.f32 %v231, %v578
    %v580 = vand.u32 %v579, 4294901760
    %581 = vmatmul.mubr.f32.gmra.mrb[0].mxu0 %v580
    %v582 = vpop.f32.mrb[0].mxu0
    %v583 = vadd.f32 %v499, %v582
    %v584 = vpop.f32.mrb[0].mxu0
    %585 = vmatprep.mubr.f32.mxu0 0.0
    %v586 = vand.u32 %v234, 4294901760
    %v587 = vsub.f32 %v234, %v586
    %v588 = vand.u32 %v587, 4294901760
    %589 = vmatmul.mubr.f32.gmra.mrb[0].mxu0 %v588
    %v590 = vpop.f32.mrb[0].mxu0
    %v591 = vadd.f32 %v506, %v590
    %v592 = vpop.f32.mrb[0].mxu0
    %593 = vdwg.mxu0
    %594 = vmatprep.subr.mxu0 0.0
    %v595 = vand.u32 %v226, 4294901760
    %v596 = vsub.f32 %v226, %v595
    %v597 = vand.u32 %v596, 4294901760
    %598 = vmatpush1.msra.mxu0 %v597
    %599 = vmatprep.subr.mxu0 0.0
    %v600 = vand.u32 %v227, 4294901760
    %v601 = vsub.f32 %v227, %v600
    %v602 = vand.u32 %v601, 4294901760
    %603 = vmatpush1.msra.mxu0 %v602
    %604 = vmatprep.subr.mxu0 0.0
    %v605 = vand.u32 %v228, 4294901760
    %v606 = vsub.f32 %v228, %v605
    %v607 = vand.u32 %v606, 4294901760
    %608 = vmatpush1.msra.mxu0 %v607
    %609 = vmatprep.subr.mxu0 0.0
    %v610 = vand.u32 %v229, 4294901760
    %v611 = vsub.f32 %v229, %v610
    %v612 = vand.u32 %v611, 4294901760
    %613 = vmatpush1.msra.mxu0 %v612
    %614 = vmatprep.subr.mxu0 0.0
    %615 = vmatpush1.msra.mxu0 0.0
    %616 = vmatprep.subr.mxu0 0.0
    %617 = vmatpush1.msra.mxu0 0.0
    %618 = vmatprep.subr.mxu0 0.0
    %619 = vmatpush1.msra.mxu0 0.0
    %620 = vmatprep.subr.mxu0 0.0
    %621 = vmatpush1.msra.mxu0 0.0
    %622 = vmatprep.subr.mxu0 0.0
    %623 = vmatpush1.msra.mxu0 0.0
    %624 = vmatprep.subr.mxu0 0.0
    %625 = vmatpush1.msra.mxu0 0.0
    %626 = vmatprep.subr.mxu0 0.0
    %627 = vmatpush1.msra.mxu0 0.0
    %628 = vmatprep.subr.mxu0 0.0
    %629 = vmatpush1.msra.mxu0 0.0
    %630 = vmatprep.subr.mxu0 0.0
    %631 = vmatpush1.msra.mxu0 0.0
    %632 = vmatprep.subr.mxu0 0.0
    %633 = vmatpush1.msra.mxu0 0.0
    %634 = vmatprep.subr.mxu0 0.0
    %635 = vmatpush1.msra.mxu0 0.0
    %636 = vmatprep.subr.mxu0 0.0
    %637 = vmatpush1.msra.mxu0 0.0
    %638 = vmatprep.subr.mxu0 0.0
    %639 = vmatpush1.msra.mxu0 0.0
    %640 = vmatprep.subr.mxu0 0.0
    %641 = vmatpush1.msra.mxu0 0.0
    %642 = vmatprep.subr.mxu0 0.0
    %643 = vmatpush1.msra.mxu0 0.0
    %644 = vmatprep.subr.mxu0 0.0
    %645 = vmatpush1.msra.mxu0 0.0
    %646 = vmatprep.subr.mxu0 0.0
    %647 = vmatpush1.msra.mxu0 0.0
    %648 = vmatprep.subr.mxu0 0.0
    %649 = vmatpush1.msra.mxu0 0.0
    %650 = vmatprep.subr.mxu0 0.0
    %651 = vmatpush1.msra.mxu0 0.0
    %652 = vmatprep.subr.mxu0 0.0
    %653 = vmatpush1.msra.mxu0 0.0
    %654 = vmatprep.subr.mxu0 0.0
    %655 = vmatpush1.msra.mxu0 0.0
    %656 = vmatprep.subr.mxu0 0.0
    %657 = vmatpush1.msra.mxu0 0.0
    %658 = vmatprep.subr.mxu0 0.0
    %659 = vmatpush1.msra.mxu0 0.0
    %660 = vmatprep.subr.mxu0 0.0
    %661 = vmatpush1.msra.mxu0 0.0
    %662 = vmatprep.subr.mxu0 0.0
    %663 = vmatpush1.msra.mxu0 0.0
    %664 = vmatprep.subr.mxu0 0.0
    %665 = vmatpush1.msra.mxu0 0.0
    %666 = vmatprep.subr.mxu0 0.0
    %667 = vmatpush1.msra.mxu0 0.0
    %668 = vmatprep.subr.mxu0 0.0
    %669 = vmatpush1.msra.mxu0 0.0
    %670 = vmatprep.mubr.f32.mxu0 0.0
    %v671 = vand.u32 %v231, 4294901760
    %672 = vmatmul.mubr.f32.gmra.mrb[0].mxu0 %v671
    %v673 = vpop.f32.mrb[0].mxu0
    %v674 = vadd.f32 %v583, %v673
    %v675 = vpop.f32.mrb[0].mxu0
    %676 = vmatprep.mubr.f32.mxu0 0.0
    %v677 = vand.u32 %v234, 4294901760
    %678 = vmatmul.mubr.f32.gmra.mrb[0].mxu0 %v677
    %v679 = vpop.f32.mrb[0].mxu0
    %v680 = vadd.f32 %v591, %v679
    %v681 = vpop.f32.mrb[0].mxu0
    %682 = vdwg.mxu0
    %683 = vmatprep.subr.mxu0 0.0
    %v684 = vand.u32 %v226, 4294901760
    %685 = vmatpush1.msra.mxu0 %v684
    %686 = vmatprep.subr.mxu0 0.0
    %v687 = vand.u32 %v227, 4294901760
    %688 = vmatpush1.msra.mxu0 %v687
    %689 = vmatprep.subr.mxu0 0.0
    %v690 = vand.u32 %v228, 4294901760
    %691 = vmatpush1.msra.mxu0 %v690
    %692 = vmatprep.subr.mxu0 0.0
    %v693 = vand.u32 %v229, 4294901760
    %694 = vmatpush1.msra.mxu0 %v693
    %695 = vmatprep.subr.mxu0 0.0
    %696 = vmatpush1.msra.mxu0 0.0
    %697 = vmatprep.subr.mxu0 0.0
    %698 = vmatpush1.msra.mxu0 0.0
    %699 = vmatprep.subr.mxu0 0.0
    %700 = vmatpush1.msra.mxu0 0.0
    %701 = vmatprep.subr.mxu0 0.0
    %702 = vmatpush1.msra.mxu0 0.0
    %703 = vmatprep.subr.mxu0 0.0
    %704 = vmatpush1.msra.mxu0 0.0
    %705 = vmatprep.subr.mxu0 0.0
    %706 = vmatpush1.msra.mxu0 0.0
    %707 = vmatprep.subr.mxu0 0.0
    %708 = vmatpush1.msra.mxu0 0.0
    %709 = vmatprep.subr.mxu0 0.0
    %710 = vmatpush1.msra.mxu0 0.0
    %711 = vmatprep.subr.mxu0 0.0
    %712 = vmatpush1.msra.mxu0 0.0
    %713 = vmatprep.subr.mxu0 0.0
    %714 = vmatpush1.msra.mxu0 0.0
    %715 = vmatprep.subr.mxu0 0.0
    %716 = vmatpush1.msra.mxu0 0.0
    %717 = vmatprep.subr.mxu0 0.0
    %718 = vmatpush1.msra.mxu0 0.0
    %719 = vmatprep.subr.mxu0 0.0
    %720 = vmatpush1.msra.mxu0 0.0
    %721 = vmatprep.subr.mxu0 0.0
    %722 = vmatpush1.msra.mxu0 0.0
    %723 = vmatprep.subr.mxu0 0.0
    %724 = vmatpush1.msra.mxu0 0.0
    %725 = vmatprep.subr.mxu0 0.0
    %726 = vmatpush1.msra.mxu0 0.0
    %727 = vmatprep.subr.mxu0 0.0
    %728 = vmatpush1.msra.mxu0 0.0
    %729 = vmatprep.subr.mxu0 0.0
    %730 = vmatpush1.msra.mxu0 0.0
    %731 = vmatprep.subr.mxu0 0.0
    %732 = vmatpush1.msra.mxu0 0.0
    %733 = vmatprep.subr.mxu0 0.0
    %734 = vmatpush1.msra.mxu0 0.0
    %735 = vmatprep.subr.mxu0 0.0
    %736 = vmatpush1.msra.mxu0 0.0
    %737 = vmatprep.subr.mxu0 0.0
    %738 = vmatpush1.msra.mxu0 0.0
    %739 = vmatprep.subr.mxu0 0.0
    %740 = vmatpush1.msra.mxu0 0.0
    %741 = vmatprep.subr.mxu0 0.0
    %742 = vmatpush1.msra.mxu0 0.0
    %743 = vmatprep.subr.mxu0 0.0
    %744 = vmatpush1.msra.mxu0 0.0
    %745 = vmatprep.subr.mxu0 0.0
    %746 = vmatpush1.msra.mxu0 0.0
    %747 = vmatprep.subr.mxu0 0.0
    %748 = vmatpush1.msra.mxu0 0.0
    %749 = vmatprep.subr.mxu0 0.0
    %750 = vmatpush1.msra.mxu0 0.0
    %751 = vmatprep.mubr.f32.mxu0 0.0
    %v752 = vand.u32 %v231, 4294901760
    %753 = vmatmul.mubr.f32.gmra.mrb[0].mxu0 %v752
    %v754 = vpop.f32.mrb[0].mxu0
    %v755 = vadd.f32 %v674, %v754
    %v756 = vpop.f32.mrb[0].mxu0
    %757 = vmatprep.mubr.f32.mxu0 0.0
    %v758 = vand.u32 %v234, 4294901760
    %759 = vmatmul.mubr.f32.gmra.mrb[0].mxu0 %v758
    %v760 = vpop.f32.mrb[0].mxu0
    %v761 = vadd.f32 %v680, %v760
    %v762 = vpop.f32.mrb[0].mxu0
    %763 = vdwg.mxu0
    %v764 = vmul.f32 %v755, 0.23570226
    %v765 = vmul.f32 %v761, 0.23570226
    %vm766 = vcmask 31744
    %v767 = vsel %vm766, %v764, -inf
    %v768 = vrot.slane %v767, 4
    %v769 = vmax.f32 %v767, %v768
    %v770 = vrot.slane %v769, 2
    %v771 = vmax.f32 %v769, %v770
    %v772 = vrot.slane %v771, 1
    %v773 = vmax.f32 %v771, %v772
    %v774 = vsel %vm766, %v765, -inf
    %v775 = vrot.slane %v774, 4
    %v776 = vmax.f32 %v774, %v775
    %v777 = vrot.slane %v776, 2
    %v778 = vmax.f32 %v776, %v777
    %v779 = vrot.slane %v778, 1
    %v780 = vmax.f32 %v778, %v779
    %v781 = vsub.f32 %v764, %v773
    %v782 = vsub.f32 %v765, %v780
    %v783 = vmul.f32 %v781, 1.442695
    %v784 = vpow.pop %v783
    %v785 = vmul.f32 %v782, 1.442695
    %v786 = vpow.pop %v785
    %v787 = vsel %vm766, %v784, 0.0
    %v788 = vrot.slane %v787, 4
    %v789 = vadd.f32 %v787, %v788
    %v790 = vrot.slane %v789, 2
    %v791 = vadd.f32 %v789, %v790
    %v792 = vrot.slane %v791, 1
    %v793 = vadd.f32 %v791, %v792
    %v794 = vsel %vm766, %v786, 0.0
    %v795 = vrot.slane %v794, 4
    %v796 = vadd.f32 %v794, %v795
    %v797 = vrot.slane %v796, 2
    %v798 = vadd.f32 %v796, %v797
    %v799 = vrot.slane %v798, 1
    %v800 = vadd.f32 %v798, %v799
    %v801 = vrcp.pop %v793
    %v802 = vmul.f32 %v784, %v801
    %v803 = vrcp.pop %v800
    %v804 = vmul.f32 %v786, %v803
    %v805 = vld [vmem:[%s8] sm:$0xf]
    %v807 = vsel %vm766, %v802, 0
    %v810 = vsel %vm766, %v804, 0
    %vm812 = vcmask 1043456
    %v814 = vsel %vm812, %v805, 0
    %816 = vmatprep.subr.mxu0 0.0
    %v817 = vand.u32 %v814, 4294901760
    %818 = vmatpush1.msra.mxu0 %v817
    %819 = vmatprep.subr.mxu0 0.0
    %820 = vmatpush1.msra.mxu0 0.0
    %821 = vmatprep.subr.mxu0 0.0
    %822 = vmatpush1.msra.mxu0 0.0
    %823 = vmatprep.subr.mxu0 0.0
    %824 = vmatpush1.msra.mxu0 0.0
    %825 = vmatprep.subr.mxu0 0.0
    %826 = vmatpush1.msra.mxu0 0.0
    %827 = vmatprep.subr.mxu0 0.0
    %828 = vmatpush1.msra.mxu0 0.0
    %829 = vmatprep.subr.mxu0 0.0
    %830 = vmatpush1.msra.mxu0 0.0
    %831 = vmatprep.subr.mxu0 0.0
    %832 = vmatpush1.msra.mxu0 0.0
    %833 = vmatprep.subr.mxu0 0.0
    %834 = vmatpush1.msra.mxu0 0.0
    %835 = vmatprep.subr.mxu0 0.0
    %836 = vmatpush1.msra.mxu0 0.0
    %837 = vmatprep.subr.mxu0 0.0
    %838 = vmatpush1.msra.mxu0 0.0
    %839 = vmatprep.subr.mxu0 0.0
    %840 = vmatpush1.msra.mxu0 0.0
    %841 = vmatprep.subr.mxu0 0.0
    %842 = vmatpush1.msra.mxu0 0.0
    %843 = vmatprep.subr.mxu0 0.0
    %844 = vmatpush1.msra.mxu0 0.0
    %845 = vmatprep.subr.mxu0 0.0
    %846 = vmatpush1.msra.mxu0 0.0
    %847 = vmatprep.subr.mxu0 0.0
    %848 = vmatpush1.msra.mxu0 0.0
    %849 = vmatprep.subr.mxu0 0.0
    %850 = vmatpush1.msra.mxu0 0.0
    %851 = vmatprep.subr.mxu0 0.0
    %852 = vmatpush1.msra.mxu0 0.0
    %853 = vmatprep.subr.mxu0 0.0
    %854 = vmatpush1.msra.mxu0 0.0
    %855 = vmatprep.subr.mxu0 0.0
    %856 = vmatpush1.msra.mxu0 0.0
    %857 = vmatprep.subr.mxu0 0.0
    %858 = vmatpush1.msra.mxu0 0.0
    %859 = vmatprep.subr.mxu0 0.0
    %860 = vmatpush1.msra.mxu0 0.0
    %861 = vmatprep.subr.mxu0 0.0
    %862 = vmatpush1.msra.mxu0 0.0
    %863 = vmatprep.subr.mxu0 0.0
    %864 = vmatpush1.msra.mxu0 0.0
    %865 = vmatprep.subr.mxu0 0.0
    %866 = vmatpush1.msra.mxu0 0.0
    %867 = vmatprep.subr.mxu0 0.0
    %868 = vmatpush1.msra.mxu0 0.0
    %869 = vmatprep.subr.mxu0 0.0
    %870 = vmatpush1.msra.mxu0 0.0
    %871 = vmatprep.subr.mxu0 0.0
    %872 = vmatpush1.msra.mxu0 0.0
    %873 = vmatprep.subr.mxu0 0.0
    %874 = vmatpush1.msra.mxu0 0.0
    %875 = vmatprep.subr.mxu0 0.0
    %876 = vmatpush1.msra.mxu0 0.0
    %877 = vmatprep.subr.mxu0 0.0
    %878 = vmatpush1.msra.mxu0 0.0
    %879 = vmatprep.subr.mxu0 0.0
    %880 = vmatpush1.msra.mxu0 0.0
    %881 = vmatprep.mubr.f32.mxu0 0.0
    %v882 = vand.u32 %v807, 4294901760
    %v883 = vsub.f32 %v807, %v882
    %v884 = vand.u32 %v883, 4294901760
    %v885 = vsub.f32 %v883, %v884
    %v886 = vand.u32 %v885, 4294901760
    %887 = vmatmul.mubr.f32.gmra.mrb[0].mxu0 %v886
    %v888 = vpop.f32.mrb[0].mxu0
    %v889 = vadd.f32 0.0, %v888
    %v890 = vpop.f32.mrb[0].mxu0
    %891 = vmatprep.mubr.f32.mxu0 0.0
    %v892 = vand.u32 %v810, 4294901760
    %v893 = vsub.f32 %v810, %v892
    %v894 = vand.u32 %v893, 4294901760
    %v895 = vsub.f32 %v893, %v894
    %v896 = vand.u32 %v895, 4294901760
    %897 = vmatmul.mubr.f32.gmra.mrb[0].mxu0 %v896
    %v898 = vpop.f32.mrb[0].mxu0
    %v899 = vadd.f32 0.0, %v898
    %v900 = vpop.f32.mrb[0].mxu0
    %901 = vdwg.mxu0
    %902 = vmatprep.subr.mxu0 0.0
    %v903 = vand.u32 %v814, 4294901760
    %v904 = vsub.f32 %v814, %v903
    %v905 = vand.u32 %v904, 4294901760
    %v906 = vsub.f32 %v904, %v905
    %v907 = vand.u32 %v906, 4294901760
    %908 = vmatpush1.msra.mxu0 %v907
    %909 = vmatprep.subr.mxu0 0.0
    %910 = vmatpush1.msra.mxu0 0.0
    %911 = vmatprep.subr.mxu0 0.0
    %912 = vmatpush1.msra.mxu0 0.0
    %913 = vmatprep.subr.mxu0 0.0
    %914 = vmatpush1.msra.mxu0 0.0
    %915 = vmatprep.subr.mxu0 0.0
    %916 = vmatpush1.msra.mxu0 0.0
    %917 = vmatprep.subr.mxu0 0.0
    %918 = vmatpush1.msra.mxu0 0.0
    %919 = vmatprep.subr.mxu0 0.0
    %920 = vmatpush1.msra.mxu0 0.0
    %921 = vmatprep.subr.mxu0 0.0
    %922 = vmatpush1.msra.mxu0 0.0
    %923 = vmatprep.subr.mxu0 0.0
    %924 = vmatpush1.msra.mxu0 0.0
    %925 = vmatprep.subr.mxu0 0.0
    %926 = vmatpush1.msra.mxu0 0.0
    %927 = vmatprep.subr.mxu0 0.0
    %928 = vmatpush1.msra.mxu0 0.0
    %929 = vmatprep.subr.mxu0 0.0
    %930 = vmatpush1.msra.mxu0 0.0
    %931 = vmatprep.subr.mxu0 0.0
    %932 = vmatpush1.msra.mxu0 0.0
    %933 = vmatprep.subr.mxu0 0.0
    %934 = vmatpush1.msra.mxu0 0.0
    %935 = vmatprep.subr.mxu0 0.0
    %936 = vmatpush1.msra.mxu0 0.0
    %937 = vmatprep.subr.mxu0 0.0
    %938 = vmatpush1.msra.mxu0 0.0
    %939 = vmatprep.subr.mxu0 0.0
    %940 = vmatpush1.msra.mxu0 0.0
    %941 = vmatprep.subr.mxu0 0.0
    %942 = vmatpush1.msra.mxu0 0.0
    %943 = vmatprep.subr.mxu0 0.0
    %944 = vmatpush1.msra.mxu0 0.0
    %945 = vmatprep.subr.mxu0 0.0
    %946 = vmatpush1.msra.mxu0 0.0
    %947 = vmatprep.subr.mxu0 0.0
    %948 = vmatpush1.msra.mxu0 0.0
    %949 = vmatprep.subr.mxu0 0.0
    %950 = vmatpush1.msra.mxu0 0.0
    %951 = vmatprep.subr.mxu0 0.0
    %952 = vmatpush1.msra.mxu0 0.0
    %953 = vmatprep.subr.mxu0 0.0
    %954 = vmatpush1.msra.mxu0 0.0
    %955 = vmatprep.subr.mxu0 0.0
    %956 = vmatpush1.msra.mxu0 0.0
    %957 = vmatprep.subr.mxu0 0.0
    %958 = vmatpush1.msra.mxu0 0.0
    %959 = vmatprep.subr.mxu0 0.0
    %960 = vmatpush1.msra.mxu0 0.0
    %961 = vmatprep.subr.mxu0 0.0
    %962 = vmatpush1.msra.mxu0 0.0
    %963 = vmatprep.subr.mxu0 0.0
    %964 = vmatpush1.msra.mxu0 0.0
    %965 = vmatprep.subr.mxu0 0.0
    %966 = vmatpush1.msra.mxu0 0.0
    %967 = vmatprep.subr.mxu0 0.0
    %968 = vmatpush1.msra.mxu0 0.0
    %969 = vmatprep.subr.mxu0 0.0
    %970 = vmatpush1.msra.mxu0 0.0
    %971 = vmatprep.mubr.f32.mxu0 0.0
    %v972 = vand.u32 %v807, 4294901760
    %973 = vmatmul.mubr.f32.gmra.mrb[0].mxu0 %v972
    %v974 = vpop.f32.mrb[0].mxu0
    %v975 = vadd.f32 %v889, %v974
    %v976 = vpop.f32.mrb[0].mxu0
    %977 = vmatprep.mubr.f32.mxu0 0.0
    %v978 = vand.u32 %v810, 4294901760
    %979 = vmatmul.mubr.f32.gmra.mrb[0].mxu0 %v978
    %v980 = vpop.f32.mrb[0].mxu0
    %v981 = vadd.f32 %v899, %v980
    %v982 = vpop.f32.mrb[0].mxu0
    %983 = vdwg.mxu0
    %984 = vmatprep.subr.mxu0 0.0
    %v985 = vand.u32 %v814, 4294901760
    %v986 = vsub.f32 %v814, %v985
    %987 = vmatpush1.msra.mxu0 %v986
    %988 = vmatprep.subr.mxu0 0.0
    %989 = vmatpush1.msra.mxu0 0.0
    %990 = vmatprep.subr.mxu0 0.0
    %991 = vmatpush1.msra.mxu0 0.0
    %992 = vmatprep.subr.mxu0 0.0
    %993 = vmatpush1.msra.mxu0 0.0
    %994 = vmatprep.subr.mxu0 0.0
    %995 = vmatpush1.msra.mxu0 0.0
    %996 = vmatprep.subr.mxu0 0.0
    %997 = vmatpush1.msra.mxu0 0.0
    %998 = vmatprep.subr.mxu0 0.0
    %999 = vmatpush1.msra.mxu0 0.0
    %1000 = vmatprep.subr.mxu0 0.0
    %1001 = vmatpush1.msra.mxu0 0.0
    %1002 = vmatprep.subr.mxu0 0.0
    %1003 = vmatpush1.msra.mxu0 0.0
    %1004 = vmatprep.subr.mxu0 0.0
    %1005 = vmatpush1.msra.mxu0 0.0
    %1006 = vmatprep.subr.mxu0 0.0
    %1007 = vmatpush1.msra.mxu0 0.0
    %1008 = vmatprep.subr.mxu0 0.0
    %1009 = vmatpush1.msra.mxu0 0.0
    %1010 = vmatprep.subr.mxu0 0.0
    %1011 = vmatpush1.msra.mxu0 0.0
    %1012 = vmatprep.subr.mxu0 0.0
    %1013 = vmatpush1.msra.mxu0 0.0
    %1014 = vmatprep.subr.mxu0 0.0
    %1015 = vmatpush1.msra.mxu0 0.0
    %1016 = vmatprep.subr.mxu0 0.0
    %1017 = vmatpush1.msra.mxu0 0.0
    %1018 = vmatprep.subr.mxu0 0.0
    %1019 = vmatpush1.msra.mxu0 0.0
    %1020 = vmatprep.subr.mxu0 0.0
    %1021 = vmatpush1.msra.mxu0 0.0
    %1022 = vmatprep.subr.mxu0 0.0
    %1023 = vmatpush1.msra.mxu0 0.0
    %1024 = vmatprep.subr.mxu0 0.0
    %1025 = vmatpush1.msra.mxu0 0.0
    %1026 = vmatprep.subr.mxu0 0.0
    %1027 = vmatpush1.msra.mxu0 0.0
    %1028 = vmatprep.subr.mxu0 0.0
    %1029 = vmatpush1.msra.mxu0 0.0
    %1030 = vmatprep.subr.mxu0 0.0
    %1031 = vmatpush1.msra.mxu0 0.0
    %1032 = vmatprep.subr.mxu0 0.0
    %1033 = vmatpush1.msra.mxu0 0.0
    %1034 = vmatprep.subr.mxu0 0.0
    %1035 = vmatpush1.msra.mxu0 0.0
    %1036 = vmatprep.subr.mxu0 0.0
    %1037 = vmatpush1.msra.mxu0 0.0
    %1038 = vmatprep.subr.mxu0 0.0
    %1039 = vmatpush1.msra.mxu0 0.0
    %1040 = vmatprep.subr.mxu0 0.0
    %1041 = vmatpush1.msra.mxu0 0.0
    %1042 = vmatprep.subr.mxu0 0.0
    %1043 = vmatpush1.msra.mxu0 0.0
    %1044 = vmatprep.subr.mxu0 0.0
    %1045 = vmatpush1.msra.mxu0 0.0
    %1046 = vmatprep.subr.mxu0 0.0
    %1047 = vmatpush1.msra.mxu0 0.0
    %1048 = vmatprep.subr.mxu0 0.0
    %1049 = vmatpush1.msra.mxu0 0.0
    %1050 = vmatprep.mubr.f32.mxu0 0.0
    %v1051 = vand.u32 %v807, 4294901760
    %v1052 = vsub.f32 %v807, %v1051
    %1053 = vmatmul.mubr.f32.gmra.mrb[0].mxu0 %v1052
    %v1054 = vpop.f32.mrb[0].mxu0
    %v1055 = vadd.f32 %v975, %v1054
    %v1056 = vpop.f32.mrb[0].mxu0
    %1057 = vmatprep.mubr.f32.mxu0 0.0
    %v1058 = vand.u32 %v810, 4294901760
    %v1059 = vsub.f32 %v810, %v1058
    %1060 = vmatmul.mubr.f32.gmra.mrb[0].mxu0 %v1059
    %v1061 = vpop.f32.mrb[0].mxu0
    %v1062 = vadd.f32 %v981, %v1061
    %v1063 = vpop.f32.mrb[0].mxu0
    %1064 = vdwg.mxu0
    %1065 = vmatprep.subr.mxu0 0.0
    %v1066 = vand.u32 %v814, 4294901760
    %1067 = vmatpush1.msra.mxu0 %v1066
    %1068 = vmatprep.subr.mxu0 0.0
    %1069 = vmatpush1.msra.mxu0 0.0
    %1070 = vmatprep.subr.mxu0 0.0
    %1071 = vmatpush1.msra.mxu0 0.0
    %1072 = vmatprep.subr.mxu0 0.0
    %1073 = vmatpush1.msra.mxu0 0.0
    %1074 = vmatprep.subr.mxu0 0.0
    %1075 = vmatpush1.msra.mxu0 0.0
    %1076 = vmatprep.subr.mxu0 0.0
    %1077 = vmatpush1.msra.mxu0 0.0
    %1078 = vmatprep.subr.mxu0 0.0
    %1079 = vmatpush1.msra.mxu0 0.0
    %1080 = vmatprep.subr.mxu0 0.0
    %1081 = vmatpush1.msra.mxu0 0.0
    %1082 = vmatprep.subr.mxu0 0.0
    %1083 = vmatpush1.msra.mxu0 0.0
    %1084 = vmatprep.subr.mxu0 0.0
    %1085 = vmatpush1.msra.mxu0 0.0
    %1086 = vmatprep.subr.mxu0 0.0
    %1087 = vmatpush1.msra.mxu0 0.0
    %1088 = vmatprep.subr.mxu0 0.0
    %1089 = vmatpush1.msra.mxu0 0.0
    %1090 = vmatprep.subr.mxu0 0.0
    %1091 = vmatpush1.msra.mxu0 0.0
    %1092 = vmatprep.subr.mxu0 0.0
    %1093 = vmatpush1.msra.mxu0 0.0
    %1094 = vmatprep.subr.mxu0 0.0
    %1095 = vmatpush1.msra.mxu0 0.0
    %1096 = vmatprep.subr.mxu0 0.0
    %1097 = vmatpush1.msra.mxu0 0.0
    %1098 = vmatprep.subr.mxu0 0.0
    %1099 = vmatpush1.msra.mxu0 0.0
    %1100 = vmatprep.subr.mxu0 0.0
    %1101 = vmatpush1.msra.mxu0 0.0
    %1102 = vmatprep.subr.mxu0 0.0
    %1103 = vmatpush1.msra.mxu0 0.0
    %1104 = vmatprep.subr.mxu0 0.0
    %1105 = vmatpush1.msra.mxu0 0.0
    %1106 = vmatprep.subr.mxu0 0.0
    %1107 = vmatpush1.msra.mxu0 0.0
    %1108 = vmatprep.subr.mxu0 0.0
    %1109 = vmatpush1.msra.mxu0 0.0
    %1110 = vmatprep.subr.mxu0 0.0
    %1111 = vmatpush1.msra.mxu0 0.0
    %1112 = vmatprep.subr.mxu0 0.0
    %1113 = vmatpush1.msra.mxu0 0.0
    %1114 = vmatprep.subr.mxu0 0.0
    %1115 = vmatpush1.msra.mxu0 0.0
    %1116 = vmatprep.subr.mxu0 0.0
    %1117 = vmatpush1.msra.mxu0 0.0
    %1118 = vmatprep.subr.mxu0 0.0
    %1119 = vmatpush1.msra.mxu0 0.0
    %1120 = vmatprep.subr.mxu0 0.0
    %1121 = vmatpush1.msra.mxu0 0.0
    %1122 = vmatprep.subr.mxu0 0.0
    %1123 = vmatpush1.msra.mxu0 0.0
    %1124 = vmatprep.subr.mxu0 0.0
    %1125 = vmatpush1.msra.mxu0 0.0
    %1126 = vmatprep.subr.mxu0 0.0
    %1127 = vmatpush1.msra.mxu0 0.0
    %1128 = vmatprep.subr.mxu0 0.0
    %1129 = vmatpush1.msra.mxu0 0.0
    %1130 = vmatprep.mubr.f32.mxu0 0.0
    %v1131 = vand.u32 %v807, 4294901760
    %v1132 = vsub.f32 %v807, %v1131
    %v1133 = vand.u32 %v1132, 4294901760
    %1134 = vmatmul.mubr.f32.gmra.mrb[0].mxu0 %v1133
    %v1135 = vpop.f32.mrb[0].mxu0
    %v1136 = vadd.f32 %v1055, %v1135
    %v1137 = vpop.f32.mrb[0].mxu0
    %1138 = vmatprep.mubr.f32.mxu0 0.0
    %v1139 = vand.u32 %v810, 4294901760
    %v1140 = vsub.f32 %v810, %v1139
    %v1141 = vand.u32 %v1140, 4294901760
    %1142 = vmatmul.mubr.f32.gmra.mrb[0].mxu0 %v1141
    %v1143 = vpop.f32.mrb[0].mxu0
    %v1144 = vadd.f32 %v1062, %v1143
    %v1145 = vpop.f32.mrb[0].mxu0
    %1146 = vdwg.mxu0
    %1147 = vmatprep.subr.mxu0 0.0
    %v1148 = vand.u32 %v814, 4294901760
    %v1149 = vsub.f32 %v814, %v1148
    %v1150 = vand.u32 %v1149, 4294901760
    %1151 = vmatpush1.msra.mxu0 %v1150
    %1152 = vmatprep.subr.mxu0 0.0
    %1153 = vmatpush1.msra.mxu0 0.0
    %1154 = vmatprep.subr.mxu0 0.0
    %1155 = vmatpush1.msra.mxu0 0.0
    %1156 = vmatprep.subr.mxu0 0.0
    %1157 = vmatpush1.msra.mxu0 0.0
    %1158 = vmatprep.subr.mxu0 0.0
    %1159 = vmatpush1.msra.mxu0 0.0
    %1160 = vmatprep.subr.mxu0 0.0
    %1161 = vmatpush1.msra.mxu0 0.0
    %1162 = vmatprep.subr.mxu0 0.0
    %1163 = vmatpush1.msra.mxu0 0.0
    %1164 = vmatprep.subr.mxu0 0.0
    %1165 = vmatpush1.msra.mxu0 0.0
    %1166 = vmatprep.subr.mxu0 0.0
    %1167 = vmatpush1.msra.mxu0 0.0
    %1168 = vmatprep.subr.mxu0 0.0
    %1169 = vmatpush1.msra.mxu0 0.0
    %1170 = vmatprep.subr.mxu0 0.0
    %1171 = vmatpush1.msra.mxu0 0.0
    %1172 = vmatprep.subr.mxu0 0.0
    %1173 = vmatpush1.msra.mxu0 0.0
    %1174 = vmatprep.subr.mxu0 0.0
    %1175 = vmatpush1.msra.mxu0 0.0
    %1176 = vmatprep.subr.mxu0 0.0
    %1177 = vmatpush1.msra.mxu0 0.0
    %1178 = vmatprep.subr.mxu0 0.0
    %1179 = vmatpush1.msra.mxu0 0.0
    %1180 = vmatprep.subr.mxu0 0.0
    %1181 = vmatpush1.msra.mxu0 0.0
    %1182 = vmatprep.subr.mxu0 0.0
    %1183 = vmatpush1.msra.mxu0 0.0
    %1184 = vmatprep.subr.mxu0 0.0
    %1185 = vmatpush1.msra.mxu0 0.0
    %1186 = vmatprep.subr.mxu0 0.0
    %1187 = vmatpush1.msra.mxu0 0.0
    %1188 = vmatprep.subr.mxu0 0.0
    %1189 = vmatpush1.msra.mxu0 0.0
    %1190 = vmatprep.subr.mxu0 0.0
    %1191 = vmatpush1.msra.mxu0 0.0
    %1192 = vmatprep.subr.mxu0 0.0
    %1193 = vmatpush1.msra.mxu0 0.0
    %1194 = vmatprep.subr.mxu0 0.0
    %1195 = vmatpush1.msra.mxu0 0.0
    %1196 = vmatprep.subr.mxu0 0.0
    %1197 = vmatpush1.msra.mxu0 0.0
    %1198 = vmatprep.subr.mxu0 0.0
    %1199 = vmatpush1.msra.mxu0 0.0
    %1200 = vmatprep.subr.mxu0 0.0
    %1201 = vmatpush1.msra.mxu0 0.0
    %1202 = vmatprep.subr.mxu0 0.0
    %1203 = vmatpush1.msra.mxu0 0.0
    %1204 = vmatprep.subr.mxu0 0.0
    %1205 = vmatpush1.msra.mxu0 0.0
    %1206 = vmatprep.subr.mxu0 0.0
    %1207 = vmatpush1.msra.mxu0 0.0
    %1208 = vmatprep.subr.mxu0 0.0
    %1209 = vmatpush1.msra.mxu0 0.0
    %1210 = vmatprep.subr.mxu0 0.0
    %1211 = vmatpush1.msra.mxu0 0.0
    %1212 = vmatprep.subr.mxu0 0.0
    %1213 = vmatpush1.msra.mxu0 0.0
    %1214 = vmatprep.mubr.f32.mxu0 0.0
    %v1215 = vand.u32 %v807, 4294901760
    %1216 = vmatmul.mubr.f32.gmra.mrb[0].mxu0 %v1215
    %v1217 = vpop.f32.mrb[0].mxu0
    %v1218 = vadd.f32 %v1136, %v1217
    %v1219 = vpop.f32.mrb[0].mxu0
    %1220 = vmatprep.mubr.f32.mxu0 0.0
    %v1221 = vand.u32 %v810, 4294901760
    %1222 = vmatmul.mubr.f32.gmra.mrb[0].mxu0 %v1221
    %v1223 = vpop.f32.mrb[0].mxu0
    %v1224 = vadd.f32 %v1144, %v1223
    %v1225 = vpop.f32.mrb[0].mxu0
    %1226 = vdwg.mxu0
    %1227 = vmatprep.subr.mxu0 0.0
    %v1228 = vand.u32 %v814, 4294901760
    %1229 = vmatpush1.msra.mxu0 %v1228
    %1230 = vmatprep.subr.mxu0 0.0
    %1231 = vmatpush1.msra.mxu0 0.0
    %1232 = vmatprep.subr.mxu0 0.0
    %1233 = vmatpush1.msra.mxu0 0.0
    %1234 = vmatprep.subr.mxu0 0.0
    %1235 = vmatpush1.msra.mxu0 0.0
    %1236 = vmatprep.subr.mxu0 0.0
    %1237 = vmatpush1.msra.mxu0 0.0
    %1238 = vmatprep.subr.mxu0 0.0
    %1239 = vmatpush1.msra.mxu0 0.0
    %1240 = vmatprep.subr.mxu0 0.0
    %1241 = vmatpush1.msra.mxu0 0.0
    %1242 = vmatprep.subr.mxu0 0.0
    %1243 = vmatpush1.msra.mxu0 0.0
    %1244 = vmatprep.subr.mxu0 0.0
    %1245 = vmatpush1.msra.mxu0 0.0
    %1246 = vmatprep.subr.mxu0 0.0
    %1247 = vmatpush1.msra.mxu0 0.0
    %1248 = vmatprep.subr.mxu0 0.0
    %1249 = vmatpush1.msra.mxu0 0.0
    %1250 = vmatprep.subr.mxu0 0.0
    %1251 = vmatpush1.msra.mxu0 0.0
    %1252 = vmatprep.subr.mxu0 0.0
    %1253 = vmatpush1.msra.mxu0 0.0
    %1254 = vmatprep.subr.mxu0 0.0
    %1255 = vmatpush1.msra.mxu0 0.0
    %1256 = vmatprep.subr.mxu0 0.0
    %1257 = vmatpush1.msra.mxu0 0.0
    %1258 = vmatprep.subr.mxu0 0.0
    %1259 = vmatpush1.msra.mxu0 0.0
    %1260 = vmatprep.subr.mxu0 0.0
    %1261 = vmatpush1.msra.mxu0 0.0
    %1262 = vmatprep.subr.mxu0 0.0
    %1263 = vmatpush1.msra.mxu0 0.0
    %1264 = vmatprep.subr.mxu0 0.0
    %1265 = vmatpush1.msra.mxu0 0.0
    %1266 = vmatprep.subr.mxu0 0.0
    %1267 = vmatpush1.msra.mxu0 0.0
    %1268 = vmatprep.subr.mxu0 0.0
    %1269 = vmatpush1.msra.mxu0 0.0
    %1270 = vmatprep.subr.mxu0 0.0
    %1271 = vmatpush1.msra.mxu0 0.0
    %1272 = vmatprep.subr.mxu0 0.0
    %1273 = vmatpush1.msra.mxu0 0.0
    %1274 = vmatprep.subr.mxu0 0.0
    %1275 = vmatpush1.msra.mxu0 0.0
    %1276 = vmatprep.subr.mxu0 0.0
    %1277 = vmatpush1.msra.mxu0 0.0
    %1278 = vmatprep.subr.mxu0 0.0
    %1279 = vmatpush1.msra.mxu0 0.0
    %1280 = vmatprep.subr.mxu0 0.0
    %1281 = vmatpush1.msra.mxu0 0.0
    %1282 = vmatprep.subr.mxu0 0.0
    %1283 = vmatpush1.msra.mxu0 0.0
    %1284 = vmatprep.subr.mxu0 0.0
    %1285 = vmatpush1.msra.mxu0 0.0
    %1286 = vmatprep.subr.mxu0 0.0
    %1287 = vmatpush1.msra.mxu0 0.0
    %1288 = vmatprep.subr.mxu0 0.0
    %1289 = vmatpush1.msra.mxu0 0.0
    %1290 = vmatprep.subr.mxu0 0.0
    %1291 = vmatpush1.msra.mxu0 0.0
    %1292 = vmatprep.mubr.f32.mxu0 0.0
    %v1293 = vand.u32 %v807, 4294901760
    %1294 = vmatmul.mubr.f32.gmra.mrb[0].mxu0 %v1293
    %v1295 = vpop.f32.mrb[0].mxu0
    %v1296 = vadd.f32 %v1218, %v1295
    %v1297 = vpop.f32.mrb[0].mxu0
    %1298 = vmatprep.mubr.f32.mxu0 0.0
    %v1299 = vand.u32 %v810, 4294901760
    %1300 = vmatmul.mubr.f32.gmra.mrb[0].mxu0 %v1299
    %v1301 = vpop.f32.mrb[0].mxu0
    %v1302 = vadd.f32 %v1224, %v1301
    %v1303 = vpop.f32.mrb[0].mxu0
    %1304 = vdwg.mxu0
    %v1305 = vld [vmem:[%s2] sm:$0xff]
    %v1306 = vld [vmem:[%s2 + $0x8] sm:$0xff]
    %v1307 = vmul.f32 %v1305, %v1296
    %v1308 = vmul.f32 %v1306, %v1302
    %1309 = vst.msk [vmem:[#allocation2] sm:$0xff] %vm50, %v1307
    %1310 = vst.msk [vmem:[#allocation2 + $0x8] sm:$0xff] %vm50, %v1308
    %1311 = vst.msk [vmem:[%s10] sm:$0xff] %vm766, %v802
    %1312 = vst.msk [vmem:[%s10 + $0x8] sm:$0xff] %vm766, %v804
    // Predicated region
    $region38: #{multi_head_attention.1} parent=1 // pred_check
      _
    $region39: #{multi_head_attention.1} parent=1 // pred_check_branch
      %1314 = sbr.rel (0) target = $region41
    $region40: #{multi_head_attention.1} parent=1 // pred_region
      %s1316 = ssub.s32 256, 256
      %1317 = vsyncadd [#allocation3], %s1316
      %s1318 = sshll.u32 [#allocation2], 4
      %s1319 = int_to_ptr.vmem [resolvable:$true] %s1318
      %1324 = dma.vmem_to_hbm [thread:$0]  %s1319, 256, %s9, [#allocation3], 128, 128, 8
    $region41: #{multi_head_attention.1} parent=1 // pred_fallthru
      _
    // Predicated region
    $region42: #{multi_head_attention.1} parent=1 // pred_check
      _
    $region43: #{multi_head_attention.1} parent=1 // pred_check_branch
      %1326 = sbr.rel (0) target = $region45
    $region44: #{multi_head_attention.1} parent=1 // pred_region
      _
    $region45: #{multi_head_attention.1} parent=1 // pred_fallthru
      _
    // Predicated region
    $region46: #{multi_head_attention.1} parent=1 // pred_check
      _
    $region47: #{multi_head_attention.1} parent=1 // pred_check_branch
      %1328 = sbr.rel (0) target = $region49
    $region48: #{multi_head_attention.1} parent=1 // pred_region
      %1329 = dma.done [#allocation3], 256
    $region49: #{multi_head_attention.1} parent=1 // pred_fallthru
      _
    // Predicated region
    $region50: #{multi_head_attention.1} parent=1 // pred_check
      _
    $region51: #{multi_head_attention.1} parent=1 // pred_check_branch
      %1331 = sbr.rel (0) target = $region53
    $region52: #{multi_head_attention.1} parent=1 // pred_region
      _
    $region53: #{multi_head_attention.1} parent=1 // pred_fallthru
      _
    %1332 = vsyncpa [#allocation3], 1

</llo_original>
